<compile_context>
chip_gen: v7x
topology: tpu7x:2x2x1
jax: 0.10.0
libtpu: 0.0.40
codegen_flags: <defaults>
</compile_context>

<pallas_src>
import jax
import jax.numpy as jnp
from jax.experimental import pallas as pl
from jax.experimental.pallas import tpu as pltpu

# ---- small synthetic config (DistilBERT-like, scaled down) ----
B, S = 2, 8                  # batch, sequence length
D, H, F, L = 32, 2, 64, 2    # hidden, heads, ffn dim, layers
VOCAB, MAX_POS = 50, 16
HD = D // H
BS = B * S
LN_EPS = 1e-12
NEG_INF = -1e30


def _layer_norm(x, gamma, beta):
    mu = jnp.mean(x, axis=-1, keepdims=True)
    var = jnp.mean((x - mu) ** 2, axis=-1, keepdims=True)
    return (x - mu) * jax.lax.rsqrt(var + LN_EPS) * gamma + beta


def _gelu(x):
    # TODO(synk): HF DistilBERT uses exact (erf) GELU; tanh approximation kept
    # for robust Mosaic lowering (~1e-3 relative difference).
    return jax.nn.gelu(x, approximate=True)


def encoder_kernel(x_ref, bias_ref, wqkv_ref, bqkv_ref, wo_ref,
                   w1_ref, b1_ref, w2_ref, vecs_ref, out_ref):
    # x: (B*S, D) flattened tokens; bias: (B*S, B*S) additive attention bias
    # (0 where same-batch & key unpadded, -1e30 elsewhere) -> the batch loop is
    # fully fused into single matmuls over the flattened token axis.
    x = x_ref[...]
    bias = bias_ref[...]
    scale = 1.0 / float(HD) ** 0.5

    for l in range(L):                    # L=2, fully unrolled; weights resident in VMEM
        wqkv = wqkv_ref[l]                # (D, 3D)
        bqkv = bqkv_ref[l]                # (1, 3D)
        wo = wo_ref[l]                    # (D, D)
        w1 = w1_ref[l]                    # (D, F)
        b1 = b1_ref[l]                    # (1, F)
        w2 = w2_ref[l]                    # (F, D)
        vecs = vecs_ref[l]                # (6, D): bo, g1, be1, b2, g2, be2
        bo, g1, be1 = vecs[0:1], vecs[1:2], vecs[2:3]
        b2, g2, be2 = vecs[3:4], vecs[4:5], vecs[5:6]

        # Fused QKV projection: one (B*S, D) @ (D, 3D) MXU push per layer.
        qkv = jnp.dot(x, wqkv, preferred_element_type=jnp.float32) + bqkv

        # Multi-head attention; output projection folded into the per-head loop
        # (concat_h(ctx_h) @ Wo == sum_h ctx_h @ Wo[h*HD:(h+1)*HD, :]).
        attn_out = jnp.broadcast_to(bo, (BS, D))
        for h in range(H):                # H=2, static unroll
            q_h = qkv[:, h * HD:(h + 1) * HD]
            k_h = qkv[:, D + h * HD:D + (h + 1) * HD]
            v_h = qkv[:, 2 * D + h * HD:2 * D + (h + 1) * HD]
            scores = jnp.dot(q_h, k_h.T,
                             preferred_element_type=jnp.float32) * scale + bias
            m = jnp.max(scores, axis=-1, keepdims=True)
            p = jnp.exp(scores - m)
            p = p * pl.reciprocal(jnp.sum(p, axis=-1, keepdims=True), approx=True)
            ctx_h = jnp.dot(p, v_h, preferred_element_type=jnp.float32)
            attn_out = attn_out + jnp.dot(ctx_h, wo[h * HD:(h + 1) * HD, :],
                                          preferred_element_type=jnp.float32)

        x = _layer_norm(x + attn_out, g1, be1)               # sa_layer_norm

        hdn = _gelu(jnp.dot(x, w1, preferred_element_type=jnp.float32) + b1)
        ffn = jnp.dot(hdn, w2, preferred_element_type=jnp.float32) + b2
        x = _layer_norm(x + ffn, g2, be2)                    # output_layer_norm

    out_ref[...] = x                      # single store of the final hidden state


def text_encoder_forward(params, input_ids, attention_mask):
    # Embedding gather + embedding LayerNorm are plain-JAX glue (dropout is
    # identity in eval).
    x = params["word_emb"][input_ids] + params["pos_emb"][None, :S, :]
    x = _layer_norm(x, params["emb_ln_g"], params["emb_ln_b"]).astype(jnp.float32)
    x = x.reshape(BS, D)

    # Additive attention bias over the flattened token axis:
    # 0 where (same batch) & (key not padded), else -1e30.
    keep_key = attention_mask.astype(jnp.float32).reshape(BS) > 0.5
    batch_id = jnp.repeat(jnp.arange(B, dtype=jnp.int32), S)
    same_batch = batch_id[:, None] == batch_id[None, :]
    bias = jnp.where(same_batch & keep_key[None, :], 0.0, NEG_INF).astype(jnp.float32)

    # Pack per-layer params: fused QKV weight/bias, and all small D-width
    # vectors stacked into one (L, 6, D) array -> 9 kernel inputs instead of 18.
    wqkv = jnp.concatenate([params["wq"], params["wk"], params["wv"]], axis=-1)
    bqkv = jnp.concatenate([params["bq"], params["bk"], params["bv"]], axis=-1)
    vecs = jnp.concatenate([params["bo"], params["g1"], params["be1"],
                            params["b2"], params["g2"], params["be2"]], axis=1)

    vmem = pl.BlockSpec(memory_space=pltpu.MemorySpace.VMEM)
    last_hidden = pl.pallas_call(
        encoder_kernel,
        out_shape=jax.ShapeDtypeStruct((BS, D), jnp.float32),
        in_specs=[vmem] * 9,
        out_specs=vmem,
    )(x, bias, wqkv, bqkv, params["wo"], params["w1"], params["b1"],
      params["w2"], vecs)

    # TextEncoder.forward: last_hidden_state[:, target_token_idx=0, :]
    return last_hidden.reshape(B, S, D)[:, 0, :]


def reference_forward(params, input_ids, attention_mask):
    x = params["word_emb"][input_ids] + params["pos_emb"][None, :S, :]
    x = _layer_norm(x, params["emb_ln_g"], params["emb_ln_b"])
    mask = attention_mask.astype(jnp.float32)[:, None, None, :]   # (B,1,1,S)
    for l in range(L):
        wq, wk, wv, wo = (params[n][l] for n in ("wq", "wk", "wv", "wo"))
        bq, bk, bv, bo = (params[n][l][0] for n in ("bq", "bk", "bv", "bo"))
        q = (x @ wq + bq).reshape(B, S, H, HD).transpose(0, 2, 1, 3)
        k = (x @ wk + bk).reshape(B, S, H, HD).transpose(0, 2, 1, 3)
        v = (x @ wv + bv).reshape(B, S, H, HD).transpose(0, 2, 1, 3)
        scores = jnp.einsum("bhqd,bhkd->bhqk", q, k) / float(HD) ** 0.5
        scores = jnp.where(mask > 0.5, scores, NEG_INF)
        p = jax.nn.softmax(scores, axis=-1)
        ctx = jnp.einsum("bhqk,bhkd->bhqd", p, v).transpose(0, 2, 1, 3).reshape(B, S, D)
        x = _layer_norm(x + ctx @ wo + bo, params["g1"][l][0], params["be1"][l][0])
        h = _gelu(x @ params["w1"][l] + params["b1"][l][0])
        x = _layer_norm(x + h @ params["w2"][l] + params["b2"][l][0],
                        params["g2"][l][0], params["be2"][l][0])
    return x[:, 0, :]


def init_params(key):
    ks = jax.random.split(key, 10)
    nrm = lambda k, shp: 0.02 * jax.random.normal(k, shp, jnp.float32)
    return dict(
        word_emb=nrm(ks[0], (VOCAB, D)),
        pos_emb=nrm(ks[1], (MAX_POS, D)),
        emb_ln_g=jnp.ones((D,), jnp.float32),
        emb_ln_b=jnp.zeros((D,), jnp.float32),
        wq=nrm(ks[2], (L, D, D)), bq=jnp.zeros((L, 1, D), jnp.float32),
        wk=nrm(ks[3], (L, D, D)), bk=jnp.zeros((L, 1, D), jnp.float32),
        wv=nrm(ks[4], (L, D, D)), bv=jnp.zeros((L, 1, D), jnp.float32),
        wo=nrm(ks[5], (L, D, D)), bo=jnp.zeros((L, 1, D), jnp.float32),
        g1=jnp.ones((L, 1, D), jnp.float32), be1=jnp.zeros((L, 1, D), jnp.float32),
        w1=nrm(ks[6], (L, D, F)), b1=jnp.zeros((L, 1, F), jnp.float32),
        w2=nrm(ks[7], (L, F, D)), b2=jnp.zeros((L, 1, D), jnp.float32),
        g2=jnp.ones((L, 1, D), jnp.float32), be2=jnp.zeros((L, 1, D), jnp.float32),
    )


if __name__ == "__main__":
    key = jax.random.PRNGKey(0)
    pkey, ikey = jax.random.split(key)
    params = init_params(pkey)

    input_ids = jax.random.randint(ikey, (B, S), 0, VOCAB, dtype=jnp.int32)
    attention_mask = jnp.ones((B, S), jnp.int32).at[:, 6:].set(0)  # 2 pad tokens

    out = jax.block_until_ready(
        text_encoder_forward(params, input_ids, attention_mask))
    assert out.shape == (B, D) and out.dtype == jnp.float32

    ref = reference_forward(params, input_ids, attention_mask)
    # Tolerance covers the EUP approx-reciprocal softmax denominator in the
    # kernel vs exact division in the reference (same tanh GELU on both sides).
    assert jnp.allclose(out, ref, rtol=2e-3, atol=2e-3), \
        float(jnp.max(jnp.abs(out - ref)))

    print("KERNEL_OK")
</pallas_src>

<mosaic_0001>
module attributes {stable_mosaic.version = 11 : i64} {
  func.func @encoder_kernel(%arg0: memref<16x32xf32, #tpu.memory_space<vmem>>, %arg1: memref<16x16xf32, #tpu.memory_space<vmem>>, %arg2: memref<2x32x96xf32, #tpu.memory_space<vmem>>, %arg3: memref<2x1x96xf32, #tpu.memory_space<vmem>>, %arg4: memref<2x32x32xf32, #tpu.memory_space<vmem>>, %arg5: memref<2x32x64xf32, #tpu.memory_space<vmem>>, %arg6: memref<2x1x64xf32, #tpu.memory_space<vmem>>, %arg7: memref<2x64x32xf32, #tpu.memory_space<vmem>>, %arg8: memref<2x6x32xf32, #tpu.memory_space<vmem>>, %arg9: memref<16x32xf32, #tpu.memory_space<vmem>>) attributes {dimension_semantics = [], scalar_prefetch = 0 : i64, scratch_operands = 0 : i64, tpu.core_type = #tpu.core_type<tc>} {
    %c0 = arith.constant 0 : index
    %c0_0 = arith.constant 0 : index
    %0 = vector.load %arg0[%c0, %c0_0] : memref<16x32xf32, #tpu.memory_space<vmem>>, vector<16x32xf32>
    %c0_1 = arith.constant 0 : index
    %c0_2 = arith.constant 0 : index
    %1 = vector.load %arg1[%c0_1, %c0_2] : memref<16x16xf32, #tpu.memory_space<vmem>>, vector<16x16xf32>
    %c0_3 = arith.constant 0 : index
    %c0_4 = arith.constant 0 : index
    %c0_5 = arith.constant 0 : index
    %2 = vector.load %arg2[%c0_3, %c0_4, %c0_5] : memref<2x32x96xf32, #tpu.memory_space<vmem>>, vector<1x32x96xf32>
    %3 = vector.shape_cast %2 : vector<1x32x96xf32> to vector<32x96xf32>
    %c0_6 = arith.constant 0 : index
    %c0_7 = arith.constant 0 : index
    %c0_8 = arith.constant 0 : index
    %4 = vector.load %arg3[%c0_6, %c0_7, %c0_8] : memref<2x1x96xf32, #tpu.memory_space<vmem>>, vector<1x1x96xf32>
    %5 = vector.shape_cast %4 : vector<1x1x96xf32> to vector<1x96xf32>
    %c0_9 = arith.constant 0 : index
    %c0_10 = arith.constant 0 : index
    %c0_11 = arith.constant 0 : index
    %6 = vector.load %arg4[%c0_9, %c0_10, %c0_11] : memref<2x32x32xf32, #tpu.memory_space<vmem>>, vector<1x32x32xf32>
    %7 = vector.shape_cast %6 : vector<1x32x32xf32> to vector<32x32xf32>
    %c0_12 = arith.constant 0 : index
    %c0_13 = arith.constant 0 : index
    %c0_14 = arith.constant 0 : index
    %8 = vector.load %arg5[%c0_12, %c0_13, %c0_14] : memref<2x32x64xf32, #tpu.memory_space<vmem>>, vector<1x32x64xf32>
    %9 = vector.shape_cast %8 : vector<1x32x64xf32> to vector<32x64xf32>
    %c0_15 = arith.constant 0 : index
    %c0_16 = arith.constant 0 : index
    %c0_17 = arith.constant 0 : index
    %10 = vector.load %arg6[%c0_15, %c0_16, %c0_17] : memref<2x1x64xf32, #tpu.memory_space<vmem>>, vector<1x1x64xf32>
    %11 = vector.shape_cast %10 : vector<1x1x64xf32> to vector<1x64xf32>
    %c0_18 = arith.constant 0 : index
    %c0_19 = arith.constant 0 : index
    %c0_20 = arith.constant 0 : index
    %12 = vector.load %arg7[%c0_18, %c0_19, %c0_20] : memref<2x64x32xf32, #tpu.memory_space<vmem>>, vector<1x64x32xf32>
    %13 = vector.shape_cast %12 : vector<1x64x32xf32> to vector<64x32xf32>
    %c0_21 = arith.constant 0 : index
    %c0_22 = arith.constant 0 : index
    %c0_23 = arith.constant 0 : index
    %14 = vector.load %arg8[%c0_21, %c0_22, %c0_23] : memref<2x6x32xf32, #tpu.memory_space<vmem>>, vector<1x6x32xf32>
    %15 = vector.shape_cast %14 : vector<1x6x32xf32> to vector<6x32xf32>
    %16 = vector.extract_strided_slice %15 {offsets = [0, 0], sizes = [1, 32], strides = [1, 1]} : vector<6x32xf32> to vector<1x32xf32>
    %17 = vector.extract_strided_slice %15 {offsets = [1, 0], sizes = [1, 32], strides = [1, 1]} : vector<6x32xf32> to vector<1x32xf32>
    %18 = vector.extract_strided_slice %15 {offsets = [2, 0], sizes = [1, 32], strides = [1, 1]} : vector<6x32xf32> to vector<1x32xf32>
    %19 = vector.extract_strided_slice %15 {offsets = [3, 0], sizes = [1, 32], strides = [1, 1]} : vector<6x32xf32> to vector<1x32xf32>
    %20 = vector.extract_strided_slice %15 {offsets = [4, 0], sizes = [1, 32], strides = [1, 1]} : vector<6x32xf32> to vector<1x32xf32>
    %21 = vector.extract_strided_slice %15 {offsets = [5, 0], sizes = [1, 32], strides = [1, 1]} : vector<6x32xf32> to vector<1x32xf32>
    %cst = arith.constant dense<0.000000e+00> : vector<16x96xf32>
    %22 = tpu.matmul %0, %3, %cst {dimension_numbers = #tpu.dot_dimension_numbers<[1], [0], [0], [1], [0, 0, 1, 1], [], []>} : vector<16x32xf32>, vector<32x96xf32>, vector<16x96xf32> -> vector<16x96xf32>
    %23 = vector.broadcast %5 : vector<1x96xf32> to vector<16x96xf32>
    %24 = arith.addf %22, %23 : vector<16x96xf32>
    %25 = vector.shape_cast %16 : vector<1x32xf32> to vector<1x32xf32>
    %26 = vector.broadcast %25 : vector<1x32xf32> to vector<16x32xf32>
    %27 = vector.extract_strided_slice %24 {offsets = [0, 0], sizes = [16, 16], strides = [1, 1]} : vector<16x96xf32> to vector<16x16xf32>
    %28 = vector.extract_strided_slice %24 {offsets = [0, 32], sizes = [16, 16], strides = [1, 1]} : vector<16x96xf32> to vector<16x16xf32>
    %29 = vector.extract_strided_slice %24 {offsets = [0, 64], sizes = [16, 16], strides = [1, 1]} : vector<16x96xf32> to vector<16x16xf32>
    %30 = tpu.transpose %28, [1, 0] : vector<16x16xf32> -> vector<16x16xf32>
    %cst_24 = arith.constant dense<0.000000e+00> : vector<16x16xf32>
    %31 = tpu.matmul %27, %30, %cst_24 {dimension_numbers = #tpu.dot_dimension_numbers<[1], [0], [0], [1], [0, 0, 1, 1], [], []>} : vector<16x16xf32>, vector<16x16xf32>, vector<16x16xf32> -> vector<16x16xf32>
    %cst_25 = arith.constant 2.500000e-01 : f32
    %32 = vector.broadcast %cst_25 : f32 to vector<16x16xf32>
    %33 = arith.mulf %31, %32 : vector<16x16xf32>
    %34 = arith.addf %33, %1 : vector<16x16xf32>
    %cst_26 = arith.constant dense<0xFF800000> : vector<16xf32>
    %35 = vector.multi_reduction <maximumf>, %34, %cst_26 [1] : vector<16x16xf32> to vector<16xf32>
    %36 = vector.shape_cast %35 : vector<16xf32> to vector<16x1xf32>
    %37 = vector.broadcast %36 : vector<16x1xf32> to vector<16x16xf32>
    %38 = arith.subf %34, %37 : vector<16x16xf32>
    %39 = math.exp %38 : vector<16x16xf32>
    %cst_27 = arith.constant dense<0.000000e+00> : vector<16xf32>
    %40 = vector.multi_reduction <add>, %39, %cst_27 [1] : vector<16x16xf32> to vector<16xf32>
    %41 = vector.shape_cast %40 : vector<16xf32> to vector<16x1xf32>
    %42 = tpu.reciprocal %41 {approx = true} : vector<16x1xf32> -> vector<16x1xf32>
    %43 = vector.broadcast %42 : vector<16x1xf32> to vector<16x16xf32>
    %44 = arith.mulf %39, %43 : vector<16x16xf32>
    %cst_28 = arith.constant dense<0.000000e+00> : vector<16x16xf32>
    %45 = tpu.matmul %44, %29, %cst_28 {dimension_numbers = #tpu.dot_dimension_numbers<[1], [0], [0], [1], [0, 0, 1, 1], [], []>} : vector<16x16xf32>, vector<16x16xf32>, vector<16x16xf32> -> vector<16x16xf32>
    %46 = vector.extract_strided_slice %7 {offsets = [0, 0], sizes = [16, 32], strides = [1, 1]} : vector<32x32xf32> to vector<16x32xf32>
    %cst_29 = arith.constant dense<0.000000e+00> : vector<16x32xf32>
    %47 = tpu.matmul %45, %46, %cst_29 {dimension_numbers = #tpu.dot_dimension_numbers<[1], [0], [0], [1], [0, 0, 1, 1], [], []>} : vector<16x16xf32>, vector<16x32xf32>, vector<16x32xf32> -> vector<16x32xf32>
    %48 = arith.addf %26, %47 : vector<16x32xf32>
    %49 = vector.extract_strided_slice %24 {offsets = [0, 16], sizes = [16, 16], strides = [1, 1]} : vector<16x96xf32> to vector<16x16xf32>
    %50 = vector.extract_strided_slice %24 {offsets = [0, 48], sizes = [16, 16], strides = [1, 1]} : vector<16x96xf32> to vector<16x16xf32>
    %51 = vector.extract_strided_slice %24 {offsets = [0, 80], sizes = [16, 16], strides = [1, 1]} : vector<16x96xf32> to vector<16x16xf32>
    %52 = tpu.transpose %50, [1, 0] : vector<16x16xf32> -> vector<16x16xf32>
    %cst_30 = arith.constant dense<0.000000e+00> : vector<16x16xf32>
    %53 = tpu.matmul %49, %52, %cst_30 {dimension_numbers = #tpu.dot_dimension_numbers<[1], [0], [0], [1], [0, 0, 1, 1], [], []>} : vector<16x16xf32>, vector<16x16xf32>, vector<16x16xf32> -> vector<16x16xf32>
    %cst_31 = arith.constant 2.500000e-01 : f32
    %54 = vector.broadcast %cst_31 : f32 to vector<16x16xf32>
    %55 = arith.mulf %53, %54 : vector<16x16xf32>
    %56 = arith.addf %55, %1 : vector<16x16xf32>
    %cst_32 = arith.constant dense<0xFF800000> : vector<16xf32>
    %57 = vector.multi_reduction <maximumf>, %56, %cst_32 [1] : vector<16x16xf32> to vector<16xf32>
    %58 = vector.shape_cast %57 : vector<16xf32> to vector<16x1xf32>
    %59 = vector.broadcast %58 : vector<16x1xf32> to vector<16x16xf32>
    %60 = arith.subf %56, %59 : vector<16x16xf32>
    %61 = math.exp %60 : vector<16x16xf32>
    %cst_33 = arith.constant dense<0.000000e+00> : vector<16xf32>
    %62 = vector.multi_reduction <add>, %61, %cst_33 [1] : vector<16x16xf32> to vector<16xf32>
    %63 = vector.shape_cast %62 : vector<16xf32> to vector<16x1xf32>
    %64 = tpu.reciprocal %63 {approx = true} : vector<16x1xf32> -> vector<16x1xf32>
    %65 = vector.broadcast %64 : vector<16x1xf32> to vector<16x16xf32>
    %66 = arith.mulf %61, %65 : vector<16x16xf32>
    %cst_34 = arith.constant dense<0.000000e+00> : vector<16x16xf32>
    %67 = tpu.matmul %66, %51, %cst_34 {dimension_numbers = #tpu.dot_dimension_numbers<[1], [0], [0], [1], [0, 0, 1, 1], [], []>} : vector<16x16xf32>, vector<16x16xf32>, vector<16x16xf32> -> vector<16x16xf32>
    %68 = vector.extract_strided_slice %7 {offsets = [16, 0], sizes = [16, 32], strides = [1, 1]} : vector<32x32xf32> to vector<16x32xf32>
    %cst_35 = arith.constant dense<0.000000e+00> : vector<16x32xf32>
    %69 = tpu.matmul %67, %68, %cst_35 {dimension_numbers = #tpu.dot_dimension_numbers<[1], [0], [0], [1], [0, 0, 1, 1], [], []>} : vector<16x16xf32>, vector<16x32xf32>, vector<16x32xf32> -> vector<16x32xf32>
    %70 = arith.addf %48, %69 : vector<16x32xf32>
    %71 = arith.addf %0, %70 : vector<16x32xf32>
    %cst_36 = arith.constant dense<0.000000e+00> : vector<16xf32>
    %72 = vector.multi_reduction <add>, %71, %cst_36 [1] : vector<16x32xf32> to vector<16xf32>
    %73 = vector.shape_cast %72 : vector<16xf32> to vector<16x1xf32>
    %cst_37 = arith.constant 3.200000e+01 : f32
    %74 = vector.broadcast %cst_37 : f32 to vector<16x1xf32>
    %75 = arith.divf %73, %74 : vector<16x1xf32>
    %76 = vector.broadcast %75 : vector<16x1xf32> to vector<16x32xf32>
    %77 = arith.subf %71, %76 : vector<16x32xf32>
    %78 = arith.mulf %77, %77 : vector<16x32xf32>
    %cst_38 = arith.constant dense<0.000000e+00> : vector<16xf32>
    %79 = vector.multi_reduction <add>, %78, %cst_38 [1] : vector<16x32xf32> to vector<16xf32>
    %80 = vector.shape_cast %79 : vector<16xf32> to vector<16x1xf32>
    %cst_39 = arith.constant 3.200000e+01 : f32
    %81 = vector.broadcast %cst_39 : f32 to vector<16x1xf32>
    %82 = arith.divf %80, %81 : vector<16x1xf32>
    %83 = vector.broadcast %75 : vector<16x1xf32> to vector<16x32xf32>
    %84 = arith.subf %71, %83 : vector<16x32xf32>
    %cst_40 = arith.constant 9.99999996E-13 : f32
    %85 = vector.broadcast %cst_40 : f32 to vector<16x1xf32>
    %86 = arith.addf %82, %85 : vector<16x1xf32>
    %87 = math.rsqrt %86 : vector<16x1xf32>
    %88 = vector.broadcast %87 : vector<16x1xf32> to vector<16x32xf32>
    %89 = arith.mulf %84, %88 : vector<16x32xf32>
    %90 = vector.broadcast %17 : vector<1x32xf32> to vector<16x32xf32>
    %91 = arith.mulf %89, %90 : vector<16x32xf32>
    %92 = vector.broadcast %18 : vector<1x32xf32> to vector<16x32xf32>
    %93 = arith.addf %91, %92 : vector<16x32xf32>
    %cst_41 = arith.constant dense<0.000000e+00> : vector<16x64xf32>
    %94 = tpu.matmul %93, %9, %cst_41 {dimension_numbers = #tpu.dot_dimension_numbers<[1], [0], [0], [1], [0, 0, 1, 1], [], []>} : vector<16x32xf32>, vector<32x64xf32>, vector<16x64xf32> -> vector<16x64xf32>
    %95 = vector.broadcast %11 : vector<1x64xf32> to vector<16x64xf32>
    %96 = arith.addf %94, %95 : vector<16x64xf32>
    %97 = arith.mulf %96, %96 : vector<16x64xf32>
    %98 = arith.mulf %96, %97 : vector<16x64xf32>
    %cst_42 = arith.constant 4.471500e-02 : f32
    %99 = vector.broadcast %cst_42 : f32 to vector<16x64xf32>
    %100 = arith.mulf %99, %98 : vector<16x64xf32>
    %101 = arith.addf %96, %100 : vector<16x64xf32>
    %cst_43 = arith.constant 0.797884583 : f32
    %102 = vector.broadcast %cst_43 : f32 to vector<16x64xf32>
    %103 = arith.mulf %102, %101 : vector<16x64xf32>
    %104 = math.tanh %103 : vector<16x64xf32>
    %cst_44 = arith.constant 1.000000e+00 : f32
    %105 = vector.broadcast %cst_44 : f32 to vector<16x64xf32>
    %106 = arith.addf %105, %104 : vector<16x64xf32>
    %cst_45 = arith.constant 5.000000e-01 : f32
    %107 = vector.broadcast %cst_45 : f32 to vector<16x64xf32>
    %108 = arith.mulf %107, %106 : vector<16x64xf32>
    %109 = arith.mulf %96, %108 : vector<16x64xf32>
    %cst_46 = arith.constant dense<0.000000e+00> : vector<16x32xf32>
    %110 = tpu.matmul %109, %13, %cst_46 {dimension_numbers = #tpu.dot_dimension_numbers<[1], [0], [0], [1], [0, 0, 1, 1], [], []>} : vector<16x64xf32>, vector<64x32xf32>, vector<16x32xf32> -> vector<16x32xf32>
    %111 = vector.broadcast %19 : vector<1x32xf32> to vector<16x32xf32>
    %112 = arith.addf %110, %111 : vector<16x32xf32>
    %113 = arith.addf %93, %112 : vector<16x32xf32>
    %cst_47 = arith.constant dense<0.000000e+00> : vector<16xf32>
    %114 = vector.multi_reduction <add>, %113, %cst_47 [1] : vector<16x32xf32> to vector<16xf32>
    %115 = vector.shape_cast %114 : vector<16xf32> to vector<16x1xf32>
    %cst_48 = arith.constant 3.200000e+01 : f32
    %116 = vector.broadcast %cst_48 : f32 to vector<16x1xf32>
    %117 = arith.divf %115, %116 : vector<16x1xf32>
    %118 = vector.broadcast %117 : vector<16x1xf32> to vector<16x32xf32>
    %119 = arith.subf %113, %118 : vector<16x32xf32>
    %120 = arith.mulf %119, %119 : vector<16x32xf32>
    %cst_49 = arith.constant dense<0.000000e+00> : vector<16xf32>
    %121 = vector.multi_reduction <add>, %120, %cst_49 [1] : vector<16x32xf32> to vector<16xf32>
    %122 = vector.shape_cast %121 : vector<16xf32> to vector<16x1xf32>
    %cst_50 = arith.constant 3.200000e+01 : f32
    %123 = vector.broadcast %cst_50 : f32 to vector<16x1xf32>
    %124 = arith.divf %122, %123 : vector<16x1xf32>
    %125 = vector.broadcast %117 : vector<16x1xf32> to vector<16x32xf32>
    %126 = arith.subf %113, %125 : vector<16x32xf32>
    %cst_51 = arith.constant 9.99999996E-13 : f32
    %127 = vector.broadcast %cst_51 : f32 to vector<16x1xf32>
    %128 = arith.addf %124, %127 : vector<16x1xf32>
    %129 = math.rsqrt %128 : vector<16x1xf32>
    %130 = vector.broadcast %129 : vector<16x1xf32> to vector<16x32xf32>
    %131 = arith.mulf %126, %130 : vector<16x32xf32>
    %132 = vector.broadcast %20 : vector<1x32xf32> to vector<16x32xf32>
    %133 = arith.mulf %131, %132 : vector<16x32xf32>
    %134 = vector.broadcast %21 : vector<1x32xf32> to vector<16x32xf32>
    %135 = arith.addf %133, %134 : vector<16x32xf32>
    %c1 = arith.constant 1 : index
    %c0_52 = arith.constant 0 : index
    %c0_53 = arith.constant 0 : index
    %136 = vector.load %arg2[%c1, %c0_52, %c0_53] : memref<2x32x96xf32, #tpu.memory_space<vmem>>, vector<1x32x96xf32>
    %137 = vector.shape_cast %136 : vector<1x32x96xf32> to vector<32x96xf32>
    %c1_54 = arith.constant 1 : index
    %c0_55 = arith.constant 0 : index
    %c0_56 = arith.constant 0 : index
    %138 = vector.load %arg3[%c1_54, %c0_55, %c0_56] : memref<2x1x96xf32, #tpu.memory_space<vmem>>, vector<1x1x96xf32>
    %139 = vector.shape_cast %138 : vector<1x1x96xf32> to vector<1x96xf32>
    %c1_57 = arith.constant 1 : index
    %c0_58 = arith.constant 0 : index
    %c0_59 = arith.constant 0 : index
    %140 = vector.load %arg4[%c1_57, %c0_58, %c0_59] : memref<2x32x32xf32, #tpu.memory_space<vmem>>, vector<1x32x32xf32>
    %141 = vector.shape_cast %140 : vector<1x32x32xf32> to vector<32x32xf32>
    %c1_60 = arith.constant 1 : index
    %c0_61 = arith.constant 0 : index
    %c0_62 = arith.constant 0 : index
    %142 = vector.load %arg5[%c1_60, %c0_61, %c0_62] : memref<2x32x64xf32, #tpu.memory_space<vmem>>, vector<1x32x64xf32>
    %143 = vector.shape_cast %142 : vector<1x32x64xf32> to vector<32x64xf32>
    %c1_63 = arith.constant 1 : index
    %c0_64 = arith.constant 0 : index
    %c0_65 = arith.constant 0 : index
    %144 = vector.load %arg6[%c1_63, %c0_64, %c0_65] : memref<2x1x64xf32, #tpu.memory_space<vmem>>, vector<1x1x64xf32>
    %145 = vector.shape_cast %144 : vector<1x1x64xf32> to vector<1x64xf32>
    %c1_66 = arith.constant 1 : index
    %c0_67 = arith.constant 0 : index
    %c0_68 = arith.constant 0 : index
    %146 = vector.load %arg7[%c1_66, %c0_67, %c0_68] : memref<2x64x32xf32, #tpu.memory_space<vmem>>, vector<1x64x32xf32>
    %147 = vector.shape_cast %146 : vector<1x64x32xf32> to vector<64x32xf32>
    %c1_69 = arith.constant 1 : index
    %c0_70 = arith.constant 0 : index
    %c0_71 = arith.constant 0 : index
    %148 = vector.load %arg8[%c1_69, %c0_70, %c0_71] : memref<2x6x32xf32, #tpu.memory_space<vmem>>, vector<1x6x32xf32>
    %149 = vector.shape_cast %148 : vector<1x6x32xf32> to vector<6x32xf32>
    %150 = vector.extract_strided_slice %149 {offsets = [0, 0], sizes = [1, 32], strides = [1, 1]} : vector<6x32xf32> to vector<1x32xf32>
    %151 = vector.extract_strided_slice %149 {offsets = [1, 0], sizes = [1, 32], strides = [1, 1]} : vector<6x32xf32> to vector<1x32xf32>
    %152 = vector.extract_strided_slice %149 {offsets = [2, 0], sizes = [1, 32], strides = [1, 1]} : vector<6x32xf32> to vector<1x32xf32>
    %153 = vector.extract_strided_slice %149 {offsets = [3, 0], sizes = [1, 32], strides = [1, 1]} : vector<6x32xf32> to vector<1x32xf32>
    %154 = vector.extract_strided_slice %149 {offsets = [4, 0], sizes = [1, 32], strides = [1, 1]} : vector<6x32xf32> to vector<1x32xf32>
    %155 = vector.extract_strided_slice %149 {offsets = [5, 0], sizes = [1, 32], strides = [1, 1]} : vector<6x32xf32> to vector<1x32xf32>
    %cst_72 = arith.constant dense<0.000000e+00> : vector<16x96xf32>
    %156 = tpu.matmul %135, %137, %cst_72 {dimension_numbers = #tpu.dot_dimension_numbers<[1], [0], [0], [1], [0, 0, 1, 1], [], []>} : vector<16x32xf32>, vector<32x96xf32>, vector<16x96xf32> -> vector<16x96xf32>
    %157 = vector.broadcast %139 : vector<1x96xf32> to vector<16x96xf32>
    %158 = arith.addf %156, %157 : vector<16x96xf32>
    %159 = vector.shape_cast %150 : vector<1x32xf32> to vector<1x32xf32>
    %160 = vector.broadcast %159 : vector<1x32xf32> to vector<16x32xf32>
    %161 = vector.extract_strided_slice %158 {offsets = [0, 0], sizes = [16, 16], strides = [1, 1]} : vector<16x96xf32> to vector<16x16xf32>
    %162 = vector.extract_strided_slice %158 {offsets = [0, 32], sizes = [16, 16], strides = [1, 1]} : vector<16x96xf32> to vector<16x16xf32>
    %163 = vector.extract_strided_slice %158 {offsets = [0, 64], sizes = [16, 16], strides = [1, 1]} : vector<16x96xf32> to vector<16x16xf32>
    %164 = tpu.transpose %162, [1, 0] : vector<16x16xf32> -> vector<16x16xf32>
    %cst_73 = arith.constant dense<0.000000e+00> : vector<16x16xf32>
    %165 = tpu.matmul %161, %164, %cst_73 {dimension_numbers = #tpu.dot_dimension_numbers<[1], [0], [0], [1], [0, 0, 1, 1], [], []>} : vector<16x16xf32>, vector<16x16xf32>, vector<16x16xf32> -> vector<16x16xf32>
    %cst_74 = arith.constant 2.500000e-01 : f32
    %166 = vector.broadcast %cst_74 : f32 to vector<16x16xf32>
    %167 = arith.mulf %165, %166 : vector<16x16xf32>
    %168 = arith.addf %167, %1 : vector<16x16xf32>
    %cst_75 = arith.constant dense<0xFF800000> : vector<16xf32>
    %169 = vector.multi_reduction <maximumf>, %168, %cst_75 [1] : vector<16x16xf32> to vector<16xf32>
    %170 = vector.shape_cast %169 : vector<16xf32> to vector<16x1xf32>
    %171 = vector.broadcast %170 : vector<16x1xf32> to vector<16x16xf32>
    %172 = arith.subf %168, %171 : vector<16x16xf32>
    %173 = math.exp %172 : vector<16x16xf32>
    %cst_76 = arith.constant dense<0.000000e+00> : vector<16xf32>
    %174 = vector.multi_reduction <add>, %173, %cst_76 [1] : vector<16x16xf32> to vector<16xf32>
    %175 = vector.shape_cast %174 : vector<16xf32> to vector<16x1xf32>
    %176 = tpu.reciprocal %175 {approx = true} : vector<16x1xf32> -> vector<16x1xf32>
    %177 = vector.broadcast %176 : vector<16x1xf32> to vector<16x16xf32>
    %178 = arith.mulf %173, %177 : vector<16x16xf32>
    %cst_77 = arith.constant dense<0.000000e+00> : vector<16x16xf32>
    %179 = tpu.matmul %178, %163, %cst_77 {dimension_numbers = #tpu.dot_dimension_numbers<[1], [0], [0], [1], [0, 0, 1, 1], [], []>} : vector<16x16xf32>, vector<16x16xf32>, vector<16x16xf32> -> vector<16x16xf32>
    %180 = vector.extract_strided_slice %141 {offsets = [0, 0], sizes = [16, 32], strides = [1, 1]} : vector<32x32xf32> to vector<16x32xf32>
    %cst_78 = arith.constant dense<0.000000e+00> : vector<16x32xf32>
    %181 = tpu.matmul %179, %180, %cst_78 {dimension_numbers = #tpu.dot_dimension_numbers<[1], [0], [0], [1], [0, 0, 1, 1], [], []>} : vector<16x16xf32>, vector<16x32xf32>, vector<16x32xf32> -> vector<16x32xf32>
    %182 = arith.addf %160, %181 : vector<16x32xf32>
    %183 = vector.extract_strided_slice %158 {offsets = [0, 16], sizes = [16, 16], strides = [1, 1]} : vector<16x96xf32> to vector<16x16xf32>
    %184 = vector.extract_strided_slice %158 {offsets = [0, 48], sizes = [16, 16], strides = [1, 1]} : vector<16x96xf32> to vector<16x16xf32>
    %185 = vector.extract_strided_slice %158 {offsets = [0, 80], sizes = [16, 16], strides = [1, 1]} : vector<16x96xf32> to vector<16x16xf32>
    %186 = tpu.transpose %184, [1, 0] : vector<16x16xf32> -> vector<16x16xf32>
    %cst_79 = arith.constant dense<0.000000e+00> : vector<16x16xf32>
    %187 = tpu.matmul %183, %186, %cst_79 {dimension_numbers = #tpu.dot_dimension_numbers<[1], [0], [0], [1], [0, 0, 1, 1], [], []>} : vector<16x16xf32>, vector<16x16xf32>, vector<16x16xf32> -> vector<16x16xf32>
    %cst_80 = arith.constant 2.500000e-01 : f32
    %188 = vector.broadcast %cst_80 : f32 to vector<16x16xf32>
    %189 = arith.mulf %187, %188 : vector<16x16xf32>
    %190 = arith.addf %189, %1 : vector<16x16xf32>
    %cst_81 = arith.constant dense<0xFF800000> : vector<16xf32>
    %191 = vector.multi_reduction <maximumf>, %190, %cst_81 [1] : vector<16x16xf32> to vector<16xf32>
    %192 = vector.shape_cast %191 : vector<16xf32> to vector<16x1xf32>
    %193 = vector.broadcast %192 : vector<16x1xf32> to vector<16x16xf32>
    %194 = arith.subf %190, %193 : vector<16x16xf32>
    %195 = math.exp %194 : vector<16x16xf32>
    %cst_82 = arith.constant dense<0.000000e+00> : vector<16xf32>
    %196 = vector.multi_reduction <add>, %195, %cst_82 [1] : vector<16x16xf32> to vector<16xf32>
    %197 = vector.shape_cast %196 : vector<16xf32> to vector<16x1xf32>
    %198 = tpu.reciprocal %197 {approx = true} : vector<16x1xf32> -> vector<16x1xf32>
    %199 = vector.broadcast %198 : vector<16x1xf32> to vector<16x16xf32>
    %200 = arith.mulf %195, %199 : vector<16x16xf32>
    %cst_83 = arith.constant dense<0.000000e+00> : vector<16x16xf32>
    %201 = tpu.matmul %200, %185, %cst_83 {dimension_numbers = #tpu.dot_dimension_numbers<[1], [0], [0], [1], [0, 0, 1, 1], [], []>} : vector<16x16xf32>, vector<16x16xf32>, vector<16x16xf32> -> vector<16x16xf32>
    %202 = vector.extract_strided_slice %141 {offsets = [16, 0], sizes = [16, 32], strides = [1, 1]} : vector<32x32xf32> to vector<16x32xf32>
    %cst_84 = arith.constant dense<0.000000e+00> : vector<16x32xf32>
    %203 = tpu.matmul %201, %202, %cst_84 {dimension_numbers = #tpu.dot_dimension_numbers<[1], [0], [0], [1], [0, 0, 1, 1], [], []>} : vector<16x16xf32>, vector<16x32xf32>, vector<16x32xf32> -> vector<16x32xf32>
    %204 = arith.addf %182, %203 : vector<16x32xf32>
    %205 = arith.addf %135, %204 : vector<16x32xf32>
    %cst_85 = arith.constant dense<0.000000e+00> : vector<16xf32>
    %206 = vector.multi_reduction <add>, %205, %cst_85 [1] : vector<16x32xf32> to vector<16xf32>
    %207 = vector.shape_cast %206 : vector<16xf32> to vector<16x1xf32>
    %cst_86 = arith.constant 3.200000e+01 : f32
    %208 = vector.broadcast %cst_86 : f32 to vector<16x1xf32>
    %209 = arith.divf %207, %208 : vector<16x1xf32>
    %210 = vector.broadcast %209 : vector<16x1xf32> to vector<16x32xf32>
    %211 = arith.subf %205, %210 : vector<16x32xf32>
    %212 = arith.mulf %211, %211 : vector<16x32xf32>
    %cst_87 = arith.constant dense<0.000000e+00> : vector<16xf32>
    %213 = vector.multi_reduction <add>, %212, %cst_87 [1] : vector<16x32xf32> to vector<16xf32>
    %214 = vector.shape_cast %213 : vector<16xf32> to vector<16x1xf32>
    %cst_88 = arith.constant 3.200000e+01 : f32
    %215 = vector.broadcast %cst_88 : f32 to vector<16x1xf32>
    %216 = arith.divf %214, %215 : vector<16x1xf32>
    %217 = vector.broadcast %209 : vector<16x1xf32> to vector<16x32xf32>
    %218 = arith.subf %205, %217 : vector<16x32xf32>
    %cst_89 = arith.constant 9.99999996E-13 : f32
    %219 = vector.broadcast %cst_89 : f32 to vector<16x1xf32>
    %220 = arith.addf %216, %219 : vector<16x1xf32>
    %221 = math.rsqrt %220 : vector<16x1xf32>
    %222 = vector.broadcast %221 : vector<16x1xf32> to vector<16x32xf32>
    %223 = arith.mulf %218, %222 : vector<16x32xf32>
    %224 = vector.broadcast %151 : vector<1x32xf32> to vector<16x32xf32>
    %225 = arith.mulf %223, %224 : vector<16x32xf32>
    %226 = vector.broadcast %152 : vector<1x32xf32> to vector<16x32xf32>
    %227 = arith.addf %225, %226 : vector<16x32xf32>
    %cst_90 = arith.constant dense<0.000000e+00> : vector<16x64xf32>
    %228 = tpu.matmul %227, %143, %cst_90 {dimension_numbers = #tpu.dot_dimension_numbers<[1], [0], [0], [1], [0, 0, 1, 1], [], []>} : vector<16x32xf32>, vector<32x64xf32>, vector<16x64xf32> -> vector<16x64xf32>
    %229 = vector.broadcast %145 : vector<1x64xf32> to vector<16x64xf32>
    %230 = arith.addf %228, %229 : vector<16x64xf32>
    %231 = arith.mulf %230, %230 : vector<16x64xf32>
    %232 = arith.mulf %230, %231 : vector<16x64xf32>
    %cst_91 = arith.constant 4.471500e-02 : f32
    %233 = vector.broadcast %cst_91 : f32 to vector<16x64xf32>
    %234 = arith.mulf %233, %232 : vector<16x64xf32>
    %235 = arith.addf %230, %234 : vector<16x64xf32>
    %cst_92 = arith.constant 0.797884583 : f32
    %236 = vector.broadcast %cst_92 : f32 to vector<16x64xf32>
    %237 = arith.mulf %236, %235 : vector<16x64xf32>
    %238 = math.tanh %237 : vector<16x64xf32>
    %cst_93 = arith.constant 1.000000e+00 : f32
    %239 = vector.broadcast %cst_93 : f32 to vector<16x64xf32>
    %240 = arith.addf %239, %238 : vector<16x64xf32>
    %cst_94 = arith.constant 5.000000e-01 : f32
    %241 = vector.broadcast %cst_94 : f32 to vector<16x64xf32>
    %242 = arith.mulf %241, %240 : vector<16x64xf32>
    %243 = arith.mulf %230, %242 : vector<16x64xf32>
    %cst_95 = arith.constant dense<0.000000e+00> : vector<16x32xf32>
    %244 = tpu.matmul %243, %147, %cst_95 {dimension_numbers = #tpu.dot_dimension_numbers<[1], [0], [0], [1], [0, 0, 1, 1], [], []>} : vector<16x64xf32>, vector<64x32xf32>, vector<16x32xf32> -> vector<16x32xf32>
    %245 = vector.broadcast %153 : vector<1x32xf32> to vector<16x32xf32>
    %246 = arith.addf %244, %245 : vector<16x32xf32>
    %247 = arith.addf %227, %246 : vector<16x32xf32>
    %cst_96 = arith.constant dense<0.000000e+00> : vector<16xf32>
    %248 = vector.multi_reduction <add>, %247, %cst_96 [1] : vector<16x32xf32> to vector<16xf32>
    %249 = vector.shape_cast %248 : vector<16xf32> to vector<16x1xf32>
    %cst_97 = arith.constant 3.200000e+01 : f32
    %250 = vector.broadcast %cst_97 : f32 to vector<16x1xf32>
    %251 = arith.divf %249, %250 : vector<16x1xf32>
    %252 = vector.broadcast %251 : vector<16x1xf32> to vector<16x32xf32>
    %253 = arith.subf %247, %252 : vector<16x32xf32>
    %254 = arith.mulf %253, %253 : vector<16x32xf32>
    %cst_98 = arith.constant dense<0.000000e+00> : vector<16xf32>
    %255 = vector.multi_reduction <add>, %254, %cst_98 [1] : vector<16x32xf32> to vector<16xf32>
    %256 = vector.shape_cast %255 : vector<16xf32> to vector<16x1xf32>
    %cst_99 = arith.constant 3.200000e+01 : f32
    %257 = vector.broadcast %cst_99 : f32 to vector<16x1xf32>
    %258 = arith.divf %256, %257 : vector<16x1xf32>
    %259 = vector.broadcast %251 : vector<16x1xf32> to vector<16x32xf32>
    %260 = arith.subf %247, %259 : vector<16x32xf32>
    %cst_100 = arith.constant 9.99999996E-13 : f32
    %261 = vector.broadcast %cst_100 : f32 to vector<16x1xf32>
    %262 = arith.addf %258, %261 : vector<16x1xf32>
    %263 = math.rsqrt %262 : vector<16x1xf32>
    %264 = vector.broadcast %263 : vector<16x1xf32> to vector<16x32xf32>
    %265 = arith.mulf %260, %264 : vector<16x32xf32>
    %266 = vector.broadcast %154 : vector<1x32xf32> to vector<16x32xf32>
    %267 = arith.mulf %265, %266 : vector<16x32xf32>
    %268 = vector.broadcast %155 : vector<1x32xf32> to vector<16x32xf32>
    %269 = arith.addf %267, %268 : vector<16x32xf32>
    %c0_101 = arith.constant 0 : index
    %c0_102 = arith.constant 0 : index
    %270 = vector.load %arg9[%c0_101, %c0_102] : memref<16x32xf32, #tpu.memory_space<vmem>>, vector<16x32xf32>
    tpu.vector_store %arg9[%c0_101, %c0_102], %269 {strides = array<i32>} : memref<16x32xf32, #tpu.memory_space<vmem>>, vector<16x32xf32>,
    return
  }
}

</mosaic_0001>

<llo_original>
// kernel: tpu_custom_call.1
$region0: #{tpu_custom_call.1}
  #allocation0 [shape = 'u32[]', space=smem, size = 0x4, offset = 0x4, fixed_abs, tag = 'smem constant byte address 0x4 - core index']
  #allocation1 [shape = 'u32[144,128]{1,0:T(1,128)}', space=vmem, size = 0x12000, scoped, tag = 'internal scratch']
  %s0 = inlined_call_operand.vmem [shape: f32[16,32], index: 0, kind: input, shape index: {}]
  %s1 = inlined_call_operand.hbm [shape: f32[16,16], index: 1, kind: input, shape index: {}]
  %s2 = inlined_call_operand.vmem [shape: f32[2,32,96], index: 2, kind: input, shape index: {}]
  %s3 = inlined_call_operand.vmem [shape: f32[2,1,96], index: 3, kind: input, shape index: {}]
  %s4 = inlined_call_operand.vmem [shape: f32[2,32,32], index: 4, kind: input, shape index: {}]
  %s5 = inlined_call_operand.vmem [shape: f32[2,32,64], index: 5, kind: input, shape index: {}]
  %s6 = inlined_call_operand.vmem [shape: f32[2,1,64], index: 6, kind: input, shape index: {}]
  %s7 = inlined_call_operand.vmem [shape: f32[2,64,32], index: 7, kind: input, shape index: {}]
  %s8 = inlined_call_operand.vmem [shape: f32[2,6,32], index: 8, kind: input, shape index: {}]
  %s9 = inlined_call_operand.hbm [shape: f32[16,32], index: 9, kind: output, shape index: {}]
  %s10 = sld [smem:[#allocation0]]
  $region50: #{tpu_custom_call.1} parent=0
    _
  %s12 = ssub.s32 1, %s10
  %s13 = scalar_select 0, %s12, %s10
  $region1: #{tpu_custom_call.1} parent=0
    #allocation2 [shape = 'u8[8192]{0}', space=vmem, size = 0x2000, scoped, tag = 'input window, operand 1, single buffered']
    #allocation3 [shape = 's32[1]{0}', space=sflag, size = 0x4, scoped, tag = 'scoped memory for tpu_custom_call.1']
    #allocation4 [shape = 's32[1]{0}', space=sflag, size = 0x4, scoped, tag = 'scoped memory for tpu_custom_call.1']
    #allocation5 [shape = 'u8[8192]{0}', space=vmem, size = 0x2000, scoped, tag = 'output window, operand 0, single buffered']
    %14 = vsyncpa [#allocation3], 0
    %15 = vsyncpa [#allocation4], 0
    // Predicated region
    $region2: #{tpu_custom_call.1} parent=1 // pred_check
      _
    $region3: #{tpu_custom_call.1} parent=1 // pred_check_branch
      %17 = sbr.rel (0) target = $region5
    $region4: #{tpu_custom_call.1} parent=1 // pred_region
      _
    $region5: #{tpu_custom_call.1} parent=1 // pred_fallthru
      _
    // Predicated region
    $region6: #{tpu_custom_call.1} parent=1 // pred_check
      _
    $region7: #{tpu_custom_call.1} parent=1 // pred_check_branch
      %19 = sbr.rel (0) target = $region9
    $region8: #{tpu_custom_call.1} parent=1 // pred_region
      %s21 = ssub.s32 256, 256
      %22 = vsyncadd [#allocation3], %s21
      %s23 = sshll.u32 [#allocation2], 4
      %s24 = int_to_ptr.vmem [resolvable:$true] %s23
      %29 = dma.hbm_to_vmem [thread:$0]  %s1, 256, %s24, [#allocation3], 128, 128, 8
    $region9: #{tpu_custom_call.1} parent=1 // pred_fallthru
      _
    // Predicated region
    $region10: #{tpu_custom_call.1} parent=1 // pred_check
      _
    $region11: #{tpu_custom_call.1} parent=1 // pred_check_branch
      %31 = sbr.rel (0) target = $region13
    $region12: #{tpu_custom_call.1} parent=1 // pred_region
      _
    $region13: #{tpu_custom_call.1} parent=1 // pred_fallthru
      _
    // Predicated region
    $region14: #{tpu_custom_call.1} parent=1 // pred_check
      _
    $region15: #{tpu_custom_call.1} parent=1 // pred_check_branch
      %33 = sbr.rel (0) target = $region17
    $region16: #{tpu_custom_call.1} parent=1 // pred_region
      _
    $region17: #{tpu_custom_call.1} parent=1 // pred_fallthru
      _
    // Predicated region
    $region18: #{tpu_custom_call.1} parent=1 // pred_check
      _
    $region19: #{tpu_custom_call.1} parent=1 // pred_check_branch
      %35 = sbr.rel (0) target = $region21
    $region20: #{tpu_custom_call.1} parent=1 // pred_region
      _
    $region21: #{tpu_custom_call.1} parent=1 // pred_fallthru
      _
    // Predicated region
    $region22: #{tpu_custom_call.1} parent=1 // pred_check
      _
    $region23: #{tpu_custom_call.1} parent=1 // pred_check_branch
      %37 = sbr.rel (0) target = $region25
    $region24: #{tpu_custom_call.1} parent=1 // pred_region
      _
    $region25: #{tpu_custom_call.1} parent=1 // pred_fallthru
      _
    // Predicated region
    $region26: #{tpu_custom_call.1} parent=1 // pred_check
      _
    $region27: #{tpu_custom_call.1} parent=1 // pred_check_branch
      %39 = sbr.rel (0) target = $region29
    $region28: #{tpu_custom_call.1} parent=1 // pred_region
      _
    $region29: #{tpu_custom_call.1} parent=1 // pred_fallthru
      _
    // Predicated region
    $region30: #{tpu_custom_call.1} parent=1 // pred_check
      _
    $region31: #{tpu_custom_call.1} parent=1 // pred_check_branch
      %41 = sbr.rel (0) target = $region33
    $region32: #{tpu_custom_call.1} parent=1 // pred_region
      _
    $region33: #{tpu_custom_call.1} parent=1 // pred_fallthru
      _
    // Predicated region
    $region34: #{tpu_custom_call.1} parent=1 // pred_check
      _
    $region35: #{tpu_custom_call.1} parent=1 // pred_check_branch
      %43 = sbr.rel (0) target = $region37
    $region36: #{tpu_custom_call.1} parent=1 // pred_region
      _
    $region37: #{tpu_custom_call.1} parent=1 // pred_fallthru
      _
    // Predicated region
    $region38: #{tpu_custom_call.1} parent=1 // pred_check
      _
    $region39: #{tpu_custom_call.1} parent=1 // pred_check_branch
      %45 = sbr.rel (0) target = $region41
    $region40: #{tpu_custom_call.1} parent=1 // pred_region
      %46 = dma.done [#allocation3], 256
    $region41: #{tpu_custom_call.1} parent=1 // pred_fallthru
      _
    %v47 = vld [vmem:[%s0] sm:$0xff]
    %v48 = vld [vmem:[%s0 + $0x8] sm:$0xff]
    %v49 = vld [vmem:[#allocation2] sm:$0xff]
    %v50 = vld [vmem:[#allocation2 + $0x8] sm:$0xff]
    %v51 = vld [vmem:[%s2] sm:$0xff]
    %v52 = vld [vmem:[%s2 + $0x8] sm:$0xff]
    %v53 = vld [vmem:[%s2 + $0x10] sm:$0xff]
    %v54 = vld [vmem:[%s2 + $0x18] sm:$0xff]
    %v55 = vld [vmem:[%s3] sm:$0x1]
    %v56 = vld [vmem:[%s4] sm:$0xff]
    %v57 = vld [vmem:[%s4 + $0x8] sm:$0xff]
    %v58 = vld [vmem:[%s4 + $0x10] sm:$0xff]
    %v59 = vld [vmem:[%s4 + $0x18] sm:$0xff]
    %v60 = vld [vmem:[%s5] sm:$0xff]
    %v61 = vld [vmem:[%s5 + $0x8] sm:$0xff]
    %v62 = vld [vmem:[%s5 + $0x10] sm:$0xff]
    %v63 = vld [vmem:[%s5 + $0x18] sm:$0xff]
    %v64 = vld [vmem:[%s6] sm:$0x1]
    %v65 = vld [vmem:[%s7] sm:$0xff]
    %v66 = vld [vmem:[%s7 + $0x8] sm:$0xff]
    %v67 = vld [vmem:[%s7 + $0x10] sm:$0xff]
    %v68 = vld [vmem:[%s7 + $0x18] sm:$0xff]
    %v69 = vld [vmem:[%s7 + $0x20] sm:$0xff]
    %v70 = vld [vmem:[%s7 + $0x28] sm:$0xff]
    %v71 = vld [vmem:[%s7 + $0x30] sm:$0xff]
    %v72 = vld [vmem:[%s7 + $0x38] sm:$0xff]
    %v73 = vld [vmem:[%s8] sm:$0x3f]
    %v75 = vlaneseq
    %v76 = vshrl.u32 %v75, 7
    %v77 = vsub.s32 0, %v76
    %v78 = vrot.slane %v55, %v77
    %vm80 = vcmask 261120
    %v82 = vsel %vm80, %v47, 0
    %v85 = vsel %vm80, %v48, 0
    %87 = vmatprep.subr.mxu0 0.0
    %88 = vmatpush1.msra.mxu0 %v51
    %89 = vmatprep.subr.mxu0 0.0
    %90 = vmatpush1.msra.mxu0 %v52
    %91 = vmatprep.subr.mxu0 0.0
    %92 = vmatpush1.msra.mxu0 %v53
    %93 = vmatprep.subr.mxu0 0.0
    %94 = vmatpush1.msra.mxu0 %v54
    %95 = vmatprep.subr.mxu0 0.0
    %96 = vmatpush1.msra.mxu0 0.0
    %97 = vmatprep.subr.mxu0 0.0
    %98 = vmatpush1.msra.mxu0 0.0
    %99 = vmatprep.subr.mxu0 0.0
    %100 = vmatpush1.msra.mxu0 0.0
    %101 = vmatprep.subr.mxu0 0.0
    %102 = vmatpush1.msra.mxu0 0.0
    %103 = vmatprep.subr.mxu0 0.0
    %104 = vmatpush1.msra.mxu0 0.0
    %105 = vmatprep.subr.mxu0 0.0
    %106 = vmatpush1.msra.mxu0 0.0
    %107 = vmatprep.subr.mxu0 0.0
    %108 = vmatpush1.msra.mxu0 0.0
    %109 = vmatprep.subr.mxu0 0.0
    %110 = vmatpush1.msra.mxu0 0.0
    %111 = vmatprep.subr.mxu0 0.0
    %112 = vmatpush1.msra.mxu0 0.0
    %113 = vmatprep.subr.mxu0 0.0
    %114 = vmatpush1.msra.mxu0 0.0
    %115 = vmatprep.subr.mxu0 0.0
    %116 = vmatpush1.msra.mxu0 0.0
    %117 = vmatprep.subr.mxu0 0.0
    %118 = vmatpush1.msra.mxu0 0.0
    %119 = vmatprep.subr.mxu0 0.0
    %120 = vmatpush1.msra.mxu0 0.0
    %121 = vmatprep.subr.mxu0 0.0
    %122 = vmatpush1.msra.mxu0 0.0
    %123 = vmatprep.subr.mxu0 0.0
    %124 = vmatpush1.msra.mxu0 0.0
    %125 = vmatprep.subr.mxu0 0.0
    %126 = vmatpush1.msra.mxu0 0.0
    %127 = vmatprep.subr.mxu0 0.0
    %128 = vmatpush1.msra.mxu0 0.0
    %129 = vmatprep.subr.mxu0 0.0
    %130 = vmatpush1.msra.mxu0 0.0
    %131 = vmatprep.subr.mxu0 0.0
    %132 = vmatpush1.msra.mxu0 0.0
    %133 = vmatprep.subr.mxu0 0.0
    %134 = vmatpush1.msra.mxu0 0.0
    %135 = vmatprep.subr.mxu0 0.0
    %136 = vmatpush1.msra.mxu0 0.0
    %137 = vmatprep.subr.mxu0 0.0
    %138 = vmatpush1.msra.mxu0 0.0
    %139 = vmatprep.subr.mxu0 0.0
    %140 = vmatpush1.msra.mxu0 0.0
    %141 = vmatprep.subr.mxu0 0.0
    %142 = vmatpush1.msra.mxu0 0.0
    %143 = vmatprep.subr.mxu0 0.0
    %144 = vmatpush1.msra.mxu0 0.0
    %145 = vmatprep.subr.mxu0 0.0
    %146 = vmatpush1.msra.mxu0 0.0
    %147 = vmatprep.subr.mxu0 0.0
    %148 = vmatpush1.msra.mxu0 0.0
    %149 = vmatprep.subr.mxu0 0.0
    %150 = vmatpush1.msra.mxu0 0.0
    %151 = vmatprep.mubr.f32.mxu0 0.0
    %152 = vmatmul.mubr.f32.gmra.mrb[0].mxu0 %v82
    %v153 = vpop.f32.mrb[0].mxu0
    %v154 = vadd.f32 %v78, %v153
    %v155 = vpop.f32.mrb[0].mxu0
    %156 = vmatprep.mubr.f32.mxu0 0.0
    %157 = vmatmul.mubr.f32.gmra.mrb[0].mxu0 %v85
    %v158 = vpop.f32.mrb[0].mxu0
    %v159 = vadd.f32 %v78, %v158
    %v160 = vpop.f32.mrb[0].mxu0
    %161 = vdwg.mxu0
    %v162 = vlaneseq
    %v163 = vshrl.u32 %v162, 7
    %v164 = vsub.s32 0, %v163
    %v165 = vrot.slane %v73, %v164
    %168 = vrot.lane.b32.xlu0 %v154, 96
    %v169 = vpop.permute.xlu0 %168
    %170 = vrot.lane.b32.xlu0 %v159, 96
    %v171 = vpop.permute.xlu0 %170
    %vm172 = vcmask 130048
    %v173 = vsel %vm172, %v154, 0
    %v175 = vsel %vm172, %v159, 0
    %v177 = vsel %vm172, %v169, 0
    %v179 = vsel %vm172, %v171, 0
    %181 = vmatprep.subr.mxu0 0.0
    %182 = vmatpush1.xpose.msra.mxu0 %v177
    %183 = vmatprep.subr.mxu0 0.0
    %184 = vmatpush1.xpose.msra.mxu0 %v179
    %185 = vmatprep.subr.mxu0 0.0
    %186 = vmatpush1.xpose.msra.mxu0 0.0
    %187 = vmatprep.subr.mxu0 0.0
    %188 = vmatpush1.xpose.msra.mxu0 0.0
    %189 = vmatprep.subr.mxu0 0.0
    %190 = vmatpush1.xpose.msra.mxu0 0.0
    %191 = vmatprep.subr.mxu0 0.0
    %192 = vmatpush1.xpose.msra.mxu0 0.0
    %193 = vmatprep.subr.mxu0 0.0
    %194 = vmatpush1.xpose.msra.mxu0 0.0
    %195 = vmatprep.subr.mxu0 0.0
    %196 = vmatpush1.xpose.msra.mxu0 0.0
    %197 = vmatprep.subr.mxu0 0.0
    %198 = vmatpush1.xpose.msra.mxu0 0.0
    %199 = vmatprep.subr.mxu0 0.0
    %200 = vmatpush1.xpose.msra.mxu0 0.0
    %201 = vmatprep.subr.mxu0 0.0
    %202 = vmatpush1.xpose.msra.mxu0 0.0
    %203 = vmatprep.subr.mxu0 0.0
    %204 = vmatpush1.xpose.msra.mxu0 0.0
    %205 = vmatprep.subr.mxu0 0.0
    %206 = vmatpush1.xpose.msra.mxu0 0.0
    %207 = vmatprep.subr.mxu0 0.0
    %208 = vmatpush1.xpose.msra.mxu0 0.0
    %209 = vmatprep.subr.mxu0 0.0
    %210 = vmatpush1.xpose.msra.mxu0 0.0
    %211 = vmatprep.subr.mxu0 0.0
    %212 = vmatpush1.xpose.msra.mxu0 0.0
    %213 = vmatprep.subr.mxu0 0.0
    %214 = vmatpush1.xpose.msra.mxu0 0.0
    %215 = vmatprep.subr.mxu0 0.0
    %216 = vmatpush1.xpose.msra.mxu0 0.0
    %217 = vmatprep.subr.mxu0 0.0
    %218 = vmatpush1.xpose.msra.mxu0 0.0
    %219 = vmatprep.subr.mxu0 0.0
    %220 = vmatpush1.xpose.msra.mxu0 0.0
    %221 = vmatprep.subr.mxu0 0.0
    %222 = vmatpush1.xpose.msra.mxu0 0.0
    %223 = vmatprep.subr.mxu0 0.0
    %224 = vmatpush1.xpose.msra.mxu0 0.0
    %225 = vmatprep.subr.mxu0 0.0
    %226 = vmatpush1.xpose.msra.mxu0 0.0
    %227 = vmatprep.subr.mxu0 0.0
    %228 = vmatpush1.xpose.msra.mxu0 0.0
    %229 = vmatprep.subr.mxu0 0.0
    %230 = vmatpush1.xpose.msra.mxu0 0.0
    %231 = vmatprep.subr.mxu0 0.0
    %232 = vmatpush1.xpose.msra.mxu0 0.0
    %233 = vmatprep.subr.mxu0 0.0
    %234 = vmatpush1.xpose.msra.mxu0 0.0
    %235 = vmatprep.subr.mxu0 0.0
    %236 = vmatpush1.xpose.msra.mxu0 0.0
    %237 = vmatprep.subr.mxu0 0.0
    %238 = vmatpush1.xpose.msra.mxu0 0.0
    %239 = vmatprep.subr.mxu0 0.0
    %240 = vmatpush1.xpose.msra.mxu0 0.0
    %241 = vmatprep.subr.mxu0 0.0
    %242 = vmatpush1.xpose.msra.mxu0 0.0
    %243 = vmatprep.subr.mxu0 0.0
    %244 = vmatpush1.xpose.msra.mxu0 0.0
    %245 = vmatprep.mubr.f32.mxu0 0.0
    %246 = vmatmul.mubr.f32.gmra.mrb[0].mxu0 %v173
    %v247 = vpop.f32.mrb[0].mxu0
    %v248 = vadd.f32 0.0, %v247
    %v249 = vpop.f32.mrb[0].mxu0
    %250 = vmatprep.mubr.f32.mxu0 0.0
    %251 = vmatmul.mubr.f32.gmra.mrb[0].mxu0 %v175
    %v252 = vpop.f32.mrb[0].mxu0
    %v253 = vadd.f32 0.0, %v252
    %v254 = vpop.f32.mrb[0].mxu0
    %255 = vdwg.mxu0
    %v256 = vmul.f32 %v248, 0.25
    %v257 = vmul.f32 %v253, 0.25
    %v258 = vadd.f32 %v256, %v49
    %v259 = vadd.f32 %v257, %v50
    %v260 = vsel %vm172, %v258, -inf
    %261 = vmax.xlane.f32.xlu0 %v260
    %v262 = vpop.xlane.xlu0 %261
    %v263 = vsel %vm172, %v259, -inf
    %264 = vmax.xlane.f32.xlu0 %v263
    %v265 = vpop.xlane.xlu0 %264
    %v266 = vsub.f32 %v258, %v262
    %v267 = vsub.f32 %v259, %v265
    %v268 = vmul.f32 %v266, 1.442695
    %v269 = vpow.pop %v268
    %v270 = vmul.f32 %v267, 1.442695
    %v271 = vpow.pop %v270
    %v272 = vsel %vm172, %v269, 0.0
    %273 = vadd.xlane.f32.xlu0 %v272
    %v274 = vpop.xlane.xlu0 %273
    %v275 = vsel %vm172, %v271, 0.0
    %276 = vadd.xlane.f32.xlu0 %v275
    %v277 = vpop.xlane.xlu0 %276
    %v278 = vrcp.pop %v274
    %v279 = vrcp.pop %v277
    %v280 = vmul.f32 %v269, %v278
    %v281 = vmul.f32 %v271, %v279
    %282 = vrot.lane.b32.xlu0 %v154, 64
    %v283 = vpop.permute.xlu0 %282
    %284 = vrot.lane.b32.xlu0 %v159, 64
    %v285 = vpop.permute.xlu0 %284
    %v289 = vsel %vm172, %v280, 0
    %v292 = vsel %vm172, %v281, 0
    %294 = vmatprep.subr.mxu0 0.0
    %295 = vmatpush1.msra.mxu0 %v283
    %296 = vmatprep.subr.mxu0 0.0
    %297 = vmatpush1.msra.mxu0 %v285
    %298 = vmatprep.subr.mxu0 0.0
    %299 = vmatpush1.msra.mxu0 0.0
    %300 = vmatprep.subr.mxu0 0.0
    %301 = vmatpush1.msra.mxu0 0.0
    %302 = vmatprep.subr.mxu0 0.0
    %303 = vmatpush1.msra.mxu0 0.0
    %304 = vmatprep.subr.mxu0 0.0
    %305 = vmatpush1.msra.mxu0 0.0
    %306 = vmatprep.subr.mxu0 0.0
    %307 = vmatpush1.msra.mxu0 0.0
    %308 = vmatprep.subr.mxu0 0.0
    %309 = vmatpush1.msra.mxu0 0.0
    %310 = vmatprep.subr.mxu0 0.0
    %311 = vmatpush1.msra.mxu0 0.0
    %312 = vmatprep.subr.mxu0 0.0
    %313 = vmatpush1.msra.mxu0 0.0
    %314 = vmatprep.subr.mxu0 0.0
    %315 = vmatpush1.msra.mxu0 0.0
    %316 = vmatprep.subr.mxu0 0.0
    %317 = vmatpush1.msra.mxu0 0.0
    %318 = vmatprep.subr.mxu0 0.0
    %319 = vmatpush1.msra.mxu0 0.0
    %320 = vmatprep.subr.mxu0 0.0
    %321 = vmatpush1.msra.mxu0 0.0
    %322 = vmatprep.subr.mxu0 0.0
    %323 = vmatpush1.msra.mxu0 0.0
    %324 = vmatprep.subr.mxu0 0.0
    %325 = vmatpush1.msra.mxu0 0.0
    %326 = vmatprep.subr.mxu0 0.0
    %327 = vmatpush1.msra.mxu0 0.0
    %328 = vmatprep.subr.mxu0 0.0
    %329 = vmatpush1.msra.mxu0 0.0
    %330 = vmatprep.subr.mxu0 0.0
    %331 = vmatpush1.msra.mxu0 0.0
    %332 = vmatprep.subr.mxu0 0.0
    %333 = vmatpush1.msra.mxu0 0.0
    %334 = vmatprep.subr.mxu0 0.0
    %335 = vmatpush1.msra.mxu0 0.0
    %336 = vmatprep.subr.mxu0 0.0
    %337 = vmatpush1.msra.mxu0 0.0
    %338 = vmatprep.subr.mxu0 0.0
    %339 = vmatpush1.msra.mxu0 0.0
    %340 = vmatprep.subr.mxu0 0.0
    %341 = vmatpush1.msra.mxu0 0.0
    %342 = vmatprep.subr.mxu0 0.0
    %343 = vmatpush1.msra.mxu0 0.0
    %344 = vmatprep.subr.mxu0 0.0
    %345 = vmatpush1.msra.mxu0 0.0
    %346 = vmatprep.subr.mxu0 0.0
    %347 = vmatpush1.msra.mxu0 0.0
    %348 = vmatprep.subr.mxu0 0.0
    %349 = vmatpush1.msra.mxu0 0.0
    %350 = vmatprep.subr.mxu0 0.0
    %351 = vmatpush1.msra.mxu0 0.0
    %352 = vmatprep.subr.mxu0 0.0
    %353 = vmatpush1.msra.mxu0 0.0
    %354 = vmatprep.subr.mxu0 0.0
    %355 = vmatpush1.msra.mxu0 0.0
    %356 = vmatprep.subr.mxu0 0.0
    %357 = vmatpush1.msra.mxu0 0.0
    %358 = vmatprep.mubr.f32.mxu0 0.0
    %359 = vmatmul.mubr.f32.gmra.mrb[0].mxu0 %v289
    %v360 = vpop.f32.mrb[0].mxu0
    %v361 = vadd.f32 0.0, %v360
    %v362 = vpop.f32.mrb[0].mxu0
    %363 = vmatprep.mubr.f32.mxu0 0.0
    %364 = vmatmul.mubr.f32.gmra.mrb[0].mxu0 %v292
    %v365 = vpop.f32.mrb[0].mxu0
    %v366 = vadd.f32 0.0, %v365
    %v367 = vpop.f32.mrb[0].mxu0
    %368 = vdwg.mxu0
    %v370 = vsel %vm172, %v361, 0
    %v373 = vsel %vm172, %v366, 0
    %375 = vmatprep.subr.mxu0 0.0
    %376 = vmatpush1.msra.mxu0 %v56
    %377 = vmatprep.subr.mxu0 0.0
    %378 = vmatpush1.msra.mxu0 %v57
    %379 = vmatprep.subr.mxu0 0.0
    %380 = vmatpush1.msra.mxu0 0.0
    %381 = vmatprep.subr.mxu0 0.0
    %382 = vmatpush1.msra.mxu0 0.0
    %383 = vmatprep.subr.mxu0 0.0
    %384 = vmatpush1.msra.mxu0 0.0
    %385 = vmatprep.subr.mxu0 0.0
    %386 = vmatpush1.msra.mxu0 0.0
    %387 = vmatprep.subr.mxu0 0.0
    %388 = vmatpush1.msra.mxu0 0.0
    %389 = vmatprep.subr.mxu0 0.0
    %390 = vmatpush1.msra.mxu0 0.0
    %391 = vmatprep.subr.mxu0 0.0
    %392 = vmatpush1.msra.mxu0 0.0
    %393 = vmatprep.subr.mxu0 0.0
    %394 = vmatpush1.msra.mxu0 0.0
    %395 = vmatprep.subr.mxu0 0.0
    %396 = vmatpush1.msra.mxu0 0.0
    %397 = vmatprep.subr.mxu0 0.0
    %398 = vmatpush1.msra.mxu0 0.0
    %399 = vmatprep.subr.mxu0 0.0
    %400 = vmatpush1.msra.mxu0 0.0
    %401 = vmatprep.subr.mxu0 0.0
    %402 = vmatpush1.msra.mxu0 0.0
    %403 = vmatprep.subr.mxu0 0.0
    %404 = vmatpush1.msra.mxu0 0.0
    %405 = vmatprep.subr.mxu0 0.0
    %406 = vmatpush1.msra.mxu0 0.0
    %407 = vmatprep.subr.mxu0 0.0
    %408 = vmatpush1.msra.mxu0 0.0
    %409 = vmatprep.subr.mxu0 0.0
    %410 = vmatpush1.msra.mxu0 0.0
    %411 = vmatprep.subr.mxu0 0.0
    %412 = vmatpush1.msra.mxu0 0.0
    %413 = vmatprep.subr.mxu0 0.0
    %414 = vmatpush1.msra.mxu0 0.0
    %415 = vmatprep.subr.mxu0 0.0
    %416 = vmatpush1.msra.mxu0 0.0
    %417 = vmatprep.subr.mxu0 0.0
    %418 = vmatpush1.msra.mxu0 0.0
    %419 = vmatprep.subr.mxu0 0.0
    %420 = vmatpush1.msra.mxu0 0.0
    %421 = vmatprep.subr.mxu0 0.0
    %422 = vmatpush1.msra.mxu0 0.0
    %423 = vmatprep.subr.mxu0 0.0
    %424 = vmatpush1.msra.mxu0 0.0
    %425 = vmatprep.subr.mxu0 0.0
    %426 = vmatpush1.msra.mxu0 0.0
    %427 = vmatprep.subr.mxu0 0.0
    %428 = vmatpush1.msra.mxu0 0.0
    %429 = vmatprep.subr.mxu0 0.0
    %430 = vmatpush1.msra.mxu0 0.0
    %431 = vmatprep.subr.mxu0 0.0
    %432 = vmatpush1.msra.mxu0 0.0
    %433 = vmatprep.subr.mxu0 0.0
    %434 = vmatpush1.msra.mxu0 0.0
    %435 = vmatprep.subr.mxu0 0.0
    %436 = vmatpush1.msra.mxu0 0.0
    %437 = vmatprep.subr.mxu0 0.0
    %438 = vmatpush1.msra.mxu0 0.0
    %439 = vmatprep.mubr.f32.mxu0 0.0
    %440 = vmatmul.mubr.f32.gmra.mrb[0].mxu0 %v370
    %v441 = vpop.f32.mrb[0].mxu0
    %v442 = vadd.f32 0.0, %v441
    %v443 = vpop.f32.mrb[0].mxu0
    %444 = vmatprep.mubr.f32.mxu0 0.0
    %445 = vmatmul.mubr.f32.gmra.mrb[0].mxu0 %v373
    %v446 = vpop.f32.mrb[0].mxu0
    %v447 = vadd.f32 0.0, %v446
    %v448 = vpop.f32.mrb[0].mxu0
    %449 = vdwg.mxu0
    %v450 = vadd.f32 %v165, %v442
    %v451 = vadd.f32 %v165, %v447
    %452 = vrot.lane.b32.xlu0 %v154, 112
    %v453 = vpop.permute.xlu0 %452
    %454 = vrot.lane.b32.xlu0 %v159, 112
    %v455 = vpop.permute.xlu0 %454
    %456 = vrot.lane.b32.xlu0 %v154, 80
    %v457 = vpop.permute.xlu0 %456
    %458 = vrot.lane.b32.xlu0 %v159, 80
    %v459 = vpop.permute.xlu0 %458
    %v460 = vsel %vm172, %v453, 0
    %v462 = vsel %vm172, %v455, 0
    %v464 = vsel %vm172, %v457, 0
    %v466 = vsel %vm172, %v459, 0
    %468 = vmatprep.subr.mxu0 0.0
    %469 = vmatpush1.xpose.msra.mxu0 %v464
    %470 = vmatprep.subr.mxu0 0.0
    %471 = vmatpush1.xpose.msra.mxu0 %v466
    %472 = vmatprep.subr.mxu0 0.0
    %473 = vmatpush1.xpose.msra.mxu0 0.0
    %474 = vmatprep.subr.mxu0 0.0
    %475 = vmatpush1.xpose.msra.mxu0 0.0
    %476 = vmatprep.subr.mxu0 0.0
    %477 = vmatpush1.xpose.msra.mxu0 0.0
    %478 = vmatprep.subr.mxu0 0.0
    %479 = vmatpush1.xpose.msra.mxu0 0.0
    %480 = vmatprep.subr.mxu0 0.0
    %481 = vmatpush1.xpose.msra.mxu0 0.0
    %482 = vmatprep.subr.mxu0 0.0
    %483 = vmatpush1.xpose.msra.mxu0 0.0
    %484 = vmatprep.subr.mxu0 0.0
    %485 = vmatpush1.xpose.msra.mxu0 0.0
    %486 = vmatprep.subr.mxu0 0.0
    %487 = vmatpush1.xpose.msra.mxu0 0.0
    %488 = vmatprep.subr.mxu0 0.0
    %489 = vmatpush1.xpose.msra.mxu0 0.0
    %490 = vmatprep.subr.mxu0 0.0
    %491 = vmatpush1.xpose.msra.mxu0 0.0
    %492 = vmatprep.subr.mxu0 0.0
    %493 = vmatpush1.xpose.msra.mxu0 0.0
    %494 = vmatprep.subr.mxu0 0.0
    %495 = vmatpush1.xpose.msra.mxu0 0.0
    %496 = vmatprep.subr.mxu0 0.0
    %497 = vmatpush1.xpose.msra.mxu0 0.0
    %498 = vmatprep.subr.mxu0 0.0
    %499 = vmatpush1.xpose.msra.mxu0 0.0
    %500 = vmatprep.subr.mxu0 0.0
    %501 = vmatpush1.xpose.msra.mxu0 0.0
    %502 = vmatprep.subr.mxu0 0.0
    %503 = vmatpush1.xpose.msra.mxu0 0.0
    %504 = vmatprep.subr.mxu0 0.0
    %505 = vmatpush1.xpose.msra.mxu0 0.0
    %506 = vmatprep.subr.mxu0 0.0
    %507 = vmatpush1.xpose.msra.mxu0 0.0
    %508 = vmatprep.subr.mxu0 0.0
    %509 = vmatpush1.xpose.msra.mxu0 0.0
    %510 = vmatprep.subr.mxu0 0.0
    %511 = vmatpush1.xpose.msra.mxu0 0.0
    %512 = vmatprep.subr.mxu0 0.0
    %513 = vmatpush1.xpose.msra.mxu0 0.0
    %514 = vmatprep.subr.mxu0 0.0
    %515 = vmatpush1.xpose.msra.mxu0 0.0
    %516 = vmatprep.subr.mxu0 0.0
    %517 = vmatpush1.xpose.msra.mxu0 0.0
    %518 = vmatprep.subr.mxu0 0.0
    %519 = vmatpush1.xpose.msra.mxu0 0.0
    %520 = vmatprep.subr.mxu0 0.0
    %521 = vmatpush1.xpose.msra.mxu0 0.0
    %522 = vmatprep.subr.mxu0 0.0
    %523 = vmatpush1.xpose.msra.mxu0 0.0
    %524 = vmatprep.subr.mxu0 0.0
    %525 = vmatpush1.xpose.msra.mxu0 0.0
    %526 = vmatprep.subr.mxu0 0.0
    %527 = vmatpush1.xpose.msra.mxu0 0.0
    %528 = vmatprep.subr.mxu0 0.0
    %529 = vmatpush1.xpose.msra.mxu0 0.0
    %530 = vmatprep.subr.mxu0 0.0
    %531 = vmatpush1.xpose.msra.mxu0 0.0
    %532 = vmatprep.mubr.f32.mxu0 0.0
    %533 = vmatmul.mubr.f32.gmra.mrb[0].mxu0 %v460
    %v534 = vpop.f32.mrb[0].mxu0
    %v535 = vadd.f32 0.0, %v534
    %v536 = vpop.f32.mrb[0].mxu0
    %537 = vmatprep.mubr.f32.mxu0 0.0
    %538 = vmatmul.mubr.f32.gmra.mrb[0].mxu0 %v462
    %v539 = vpop.f32.mrb[0].mxu0
    %v540 = vadd.f32 0.0, %v539
    %v541 = vpop.f32.mrb[0].mxu0
    %542 = vdwg.mxu0
    %v543 = vmul.f32 %v535, 0.25
    %v544 = vmul.f32 %v540, 0.25
    %v545 = vadd.f32 %v543, %v49
    %v546 = vadd.f32 %v544, %v50
    %v547 = vsel %vm172, %v545, -inf
    %548 = vmax.xlane.f32.xlu0 %v547
    %v549 = vpop.xlane.xlu0 %548
    %v550 = vsel %vm172, %v546, -inf
    %551 = vmax.xlane.f32.xlu0 %v550
    %v552 = vpop.xlane.xlu0 %551
    %v553 = vsub.f32 %v545, %v549
    %v554 = vsub.f32 %v546, %v552
    %v555 = vmul.f32 %v553, 1.442695
    %v556 = vpow.pop %v555
    %v557 = vmul.f32 %v554, 1.442695
    %v558 = vpow.pop %v557
    %v559 = vsel %vm172, %v556, 0.0
    %560 = vadd.xlane.f32.xlu0 %v559
    %v561 = vpop.xlane.xlu0 %560
    %v562 = vsel %vm172, %v558, 0.0
    %563 = vadd.xlane.f32.xlu0 %v562
    %v564 = vpop.xlane.xlu0 %563
    %v565 = vrcp.pop %v561
    %v566 = vrcp.pop %v564
    %v567 = vmul.f32 %v556, %v565
    %v568 = vmul.f32 %v558, %v566
    %569 = vrot.lane.b32.xlu0 %v154, 48
    %v570 = vpop.permute.xlu0 %569
    %571 = vrot.lane.b32.xlu0 %v159, 48
    %v572 = vpop.permute.xlu0 %571
    %v576 = vsel %vm172, %v567, 0
    %v579 = vsel %vm172, %v568, 0
    %581 = vmatprep.subr.mxu0 0.0
    %582 = vmatpush1.msra.mxu0 %v570
    %583 = vmatprep.subr.mxu0 0.0
    %584 = vmatpush1.msra.mxu0 %v572
    %585 = vmatprep.subr.mxu0 0.0
    %586 = vmatpush1.msra.mxu0 0.0
    %587 = vmatprep.subr.mxu0 0.0
    %588 = vmatpush1.msra.mxu0 0.0
    %589 = vmatprep.subr.mxu0 0.0
    %590 = vmatpush1.msra.mxu0 0.0
    %591 = vmatprep.subr.mxu0 0.0
    %592 = vmatpush1.msra.mxu0 0.0
    %593 = vmatprep.subr.mxu0 0.0
    %594 = vmatpush1.msra.mxu0 0.0
    %595 = vmatprep.subr.mxu0 0.0
    %596 = vmatpush1.msra.mxu0 0.0
    %597 = vmatprep.subr.mxu0 0.0
    %598 = vmatpush1.msra.mxu0 0.0
    %599 = vmatprep.subr.mxu0 0.0
    %600 = vmatpush1.msra.mxu0 0.0
    %601 = vmatprep.subr.mxu0 0.0
    %602 = vmatpush1.msra.mxu0 0.0
    %603 = vmatprep.subr.mxu0 0.0
    %604 = vmatpush1.msra.mxu0 0.0
    %605 = vmatprep.subr.mxu0 0.0
    %606 = vmatpush1.msra.mxu0 0.0
    %607 = vmatprep.subr.mxu0 0.0
    %608 = vmatpush1.msra.mxu0 0.0
    %609 = vmatprep.subr.mxu0 0.0
    %610 = vmatpush1.msra.mxu0 0.0
    %611 = vmatprep.subr.mxu0 0.0
    %612 = vmatpush1.msra.mxu0 0.0
    %613 = vmatprep.subr.mxu0 0.0
    %614 = vmatpush1.msra.mxu0 0.0
    %615 = vmatprep.subr.mxu0 0.0
    %616 = vmatpush1.msra.mxu0 0.0
    %617 = vmatprep.subr.mxu0 0.0
    %618 = vmatpush1.msra.mxu0 0.0
    %619 = vmatprep.subr.mxu0 0.0
    %620 = vmatpush1.msra.mxu0 0.0
    %621 = vmatprep.subr.mxu0 0.0
    %622 = vmatpush1.msra.mxu0 0.0
    %623 = vmatprep.subr.mxu0 0.0
    %624 = vmatpush1.msra.mxu0 0.0
    %625 = vmatprep.subr.mxu0 0.0
    %626 = vmatpush1.msra.mxu0 0.0
    %627 = vmatprep.subr.mxu0 0.0
    %628 = vmatpush1.msra.mxu0 0.0
    %629 = vmatprep.subr.mxu0 0.0
    %630 = vmatpush1.msra.mxu0 0.0
    %631 = vmatprep.subr.mxu0 0.0
    %632 = vmatpush1.msra.mxu0 0.0
    %633 = vmatprep.subr.mxu0 0.0
    %634 = vmatpush1.msra.mxu0 0.0
    %635 = vmatprep.subr.mxu0 0.0
    %636 = vmatpush1.msra.mxu0 0.0
    %637 = vmatprep.subr.mxu0 0.0
    %638 = vmatpush1.msra.mxu0 0.0
    %639 = vmatprep.subr.mxu0 0.0
    %640 = vmatpush1.msra.mxu0 0.0
    %641 = vmatprep.subr.mxu0 0.0
    %642 = vmatpush1.msra.mxu0 0.0
    %643 = vmatprep.subr.mxu0 0.0
    %644 = vmatpush1.msra.mxu0 0.0
    %645 = vmatprep.mubr.f32.mxu0 0.0
    %646 = vmatmul.mubr.f32.gmra.mrb[0].mxu0 %v576
    %v647 = vpop.f32.mrb[0].mxu0
    %v648 = vadd.f32 0.0, %v647
    %v649 = vpop.f32.mrb[0].mxu0
    %650 = vmatprep.mubr.f32.mxu0 0.0
    %651 = vmatmul.mubr.f32.gmra.mrb[0].mxu0 %v579
    %v652 = vpop.f32.mrb[0].mxu0
    %v653 = vadd.f32 0.0, %v652
    %v654 = vpop.f32.mrb[0].mxu0
    %655 = vdwg.mxu0
    %v657 = vsel %vm172, %v648, 0
    %v660 = vsel %vm172, %v653, 0
    %662 = vmatprep.subr.mxu0 0.0
    %663 = vmatpush1.msra.mxu0 %v58
    %664 = vmatprep.subr.mxu0 0.0
    %665 = vmatpush1.msra.mxu0 %v59
    %666 = vmatprep.subr.mxu0 0.0
    %667 = vmatpush1.msra.mxu0 0.0
    %668 = vmatprep.subr.mxu0 0.0
    %669 = vmatpush1.msra.mxu0 0.0
    %670 = vmatprep.subr.mxu0 0.0
    %671 = vmatpush1.msra.mxu0 0.0
    %672 = vmatprep.subr.mxu0 0.0
    %673 = vmatpush1.msra.mxu0 0.0
    %674 = vmatprep.subr.mxu0 0.0
    %675 = vmatpush1.msra.mxu0 0.0
    %676 = vmatprep.subr.mxu0 0.0
    %677 = vmatpush1.msra.mxu0 0.0
    %678 = vmatprep.subr.mxu0 0.0
    %679 = vmatpush1.msra.mxu0 0.0
    %680 = vmatprep.subr.mxu0 0.0
    %681 = vmatpush1.msra.mxu0 0.0
    %682 = vmatprep.subr.mxu0 0.0
    %683 = vmatpush1.msra.mxu0 0.0
    %684 = vmatprep.subr.mxu0 0.0
    %685 = vmatpush1.msra.mxu0 0.0
    %686 = vmatprep.subr.mxu0 0.0
    %687 = vmatpush1.msra.mxu0 0.0
    %688 = vmatprep.subr.mxu0 0.0
    %689 = vmatpush1.msra.mxu0 0.0
    %690 = vmatprep.subr.mxu0 0.0
    %691 = vmatpush1.msra.mxu0 0.0
    %692 = vmatprep.subr.mxu0 0.0
    %693 = vmatpush1.msra.mxu0 0.0
    %694 = vmatprep.subr.mxu0 0.0
    %695 = vmatpush1.msra.mxu0 0.0
    %696 = vmatprep.subr.mxu0 0.0
    %697 = vmatpush1.msra.mxu0 0.0
    %698 = vmatprep.subr.mxu0 0.0
    %699 = vmatpush1.msra.mxu0 0.0
    %700 = vmatprep.subr.mxu0 0.0
    %701 = vmatpush1.msra.mxu0 0.0
    %702 = vmatprep.subr.mxu0 0.0
    %703 = vmatpush1.msra.mxu0 0.0
    %704 = vmatprep.subr.mxu0 0.0
    %705 = vmatpush1.msra.mxu0 0.0
    %706 = vmatprep.subr.mxu0 0.0
    %707 = vmatpush1.msra.mxu0 0.0
    %708 = vmatprep.subr.mxu0 0.0
    %709 = vmatpush1.msra.mxu0 0.0
    %710 = vmatprep.subr.mxu0 0.0
    %711 = vmatpush1.msra.mxu0 0.0
    %712 = vmatprep.subr.mxu0 0.0
    %713 = vmatpush1.msra.mxu0 0.0
    %714 = vmatprep.subr.mxu0 0.0
    %715 = vmatpush1.msra.mxu0 0.0
    %716 = vmatprep.subr.mxu0 0.0
    %717 = vmatpush1.msra.mxu0 0.0
    %718 = vmatprep.subr.mxu0 0.0
    %719 = vmatpush1.msra.mxu0 0.0
    %720 = vmatprep.subr.mxu0 0.0
    %721 = vmatpush1.msra.mxu0 0.0
    %722 = vmatprep.subr.mxu0 0.0
    %723 = vmatpush1.msra.mxu0 0.0
    %724 = vmatprep.subr.mxu0 0.0
    %725 = vmatpush1.msra.mxu0 0.0
    %726 = vmatprep.mubr.f32.mxu0 0.0
    %727 = vmatmul.mubr.f32.gmra.mrb[0].mxu0 %v657
    %v728 = vpop.f32.mrb[0].mxu0
    %v729 = vadd.f32 0.0, %v728
    %v730 = vpop.f32.mrb[0].mxu0
    %731 = vmatprep.mubr.f32.mxu0 0.0
    %732 = vmatmul.mubr.f32.gmra.mrb[0].mxu0 %v660
    %v733 = vpop.f32.mrb[0].mxu0
    %v734 = vadd.f32 0.0, %v733
    %v735 = vpop.f32.mrb[0].mxu0
    %736 = vdwg.mxu0
    %v737 = vadd.f32 %v450, %v729
    %v738 = vadd.f32 %v451, %v734
    %v739 = vadd.f32 %v47, %v737
    %v740 = vadd.f32 %v48, %v738
    %v741 = vsel %vm80, %v739, 0.0
    %742 = vadd.xlane.f32.xlu0 %v741
    %v743 = vpop.xlane.xlu0 %742
    %v744 = vsel %vm80, %v740, 0.0
    %745 = vadd.xlane.f32.xlu0 %v744
    %v746 = vpop.xlane.xlu0 %745
    %v747 = vrcp.pop 32.0
    %v748 = vmul.f32 %v743, %v747
    %v749 = vmul.f32 %v746, %v747
    %v750 = vsub.f32 %v739, %v748
    %v751 = vsub.f32 %v740, %v749
    %v752 = vmul.f32 %v750, %v750
    %v753 = vmul.f32 %v751, %v751
    %v754 = vsel %vm80, %v752, 0.0
    %755 = vadd.xlane.f32.xlu0 %v754
    %v756 = vpop.xlane.xlu0 %755
    %v757 = vsel %vm80, %v753, 0.0
    %758 = vadd.xlane.f32.xlu0 %v757
    %v759 = vpop.xlane.xlu0 %758
    %v760 = vmul.f32 %v756, %v747
    %v761 = vmul.f32 %v759, %v747
    %v762 = vadd.f32 %v760, 1e-12
    %v763 = vadd.f32 %v761, 1e-12
    %v764 = vrsqrt.pop %v762
    %v765 = vrsqrt.pop %v763
    %v766 = vmul.f32 %v750, %v764
    %v767 = vmul.f32 %v751, %v765
    %v768 = vlaneseq
    %v769 = vshrl.u32 %v768, 7
    %v770 = vsub.s32 1, %v769
    %v771 = vrot.slane %v73, %v770
    %v772 = vmul.f32 %v766, %v771
    %v773 = vmul.f32 %v767, %v771
    %v774 = vlaneseq
    %v775 = vshrl.u32 %v774, 7
    %v776 = vsub.s32 2, %v775
    %v777 = vrot.slane %v73, %v776
    %v778 = vadd.f32 %v772, %v777
    %v779 = vadd.f32 %v773, %v777
    %v781 = vlaneseq
    %v782 = vshrl.u32 %v781, 7
    %v783 = vsub.s32 0, %v782
    %v784 = vrot.slane %v64, %v783
    %v787 = vsel %vm80, %v778, 0
    %v790 = vsel %vm80, %v779, 0
    %792 = vmatprep.subr.mxu0 0.0
    %793 = vmatpush1.msra.mxu0 %v60
    %794 = vmatprep.subr.mxu0 0.0
    %795 = vmatpush1.msra.mxu0 %v61
    %796 = vmatprep.subr.mxu0 0.0
    %797 = vmatpush1.msra.mxu0 %v62
    %798 = vmatprep.subr.mxu0 0.0
    %799 = vmatpush1.msra.mxu0 %v63
    %800 = vmatprep.subr.mxu0 0.0
    %801 = vmatpush1.msra.mxu0 0.0
    %802 = vmatprep.subr.mxu0 0.0
    %803 = vmatpush1.msra.mxu0 0.0
    %804 = vmatprep.subr.mxu0 0.0
    %805 = vmatpush1.msra.mxu0 0.0
    %806 = vmatprep.subr.mxu0 0.0
    %807 = vmatpush1.msra.mxu0 0.0
    %808 = vmatprep.subr.mxu0 0.0
    %809 = vmatpush1.msra.mxu0 0.0
    %810 = vmatprep.subr.mxu0 0.0
    %811 = vmatpush1.msra.mxu0 0.0
    %812 = vmatprep.subr.mxu0 0.0
    %813 = vmatpush1.msra.mxu0 0.0
    %814 = vmatprep.subr.mxu0 0.0
    %815 = vmatpush1.msra.mxu0 0.0
    %816 = vmatprep.subr.mxu0 0.0
    %817 = vmatpush1.msra.mxu0 0.0
    %818 = vmatprep.subr.mxu0 0.0
    %819 = vmatpush1.msra.mxu0 0.0
    %820 = vmatprep.subr.mxu0 0.0
    %821 = vmatpush1.msra.mxu0 0.0
    %822 = vmatprep.subr.mxu0 0.0
    %823 = vmatpush1.msra.mxu0 0.0
    %824 = vmatprep.subr.mxu0 0.0
    %825 = vmatpush1.msra.mxu0 0.0
    %826 = vmatprep.subr.mxu0 0.0
    %827 = vmatpush1.msra.mxu0 0.0
    %828 = vmatprep.subr.mxu0 0.0
    %829 = vmatpush1.msra.mxu0 0.0
    %830 = vmatprep.subr.mxu0 0.0
    %831 = vmatpush1.msra.mxu0 0.0
    %832 = vmatprep.subr.mxu0 0.0
    %833 = vmatpush1.msra.mxu0 0.0
    %834 = vmatprep.subr.mxu0 0.0
    %835 = vmatpush1.msra.mxu0 0.0
    %836 = vmatprep.subr.mxu0 0.0
    %837 = vmatpush1.msra.mxu0 0.0
    %838 = vmatprep.subr.mxu0 0.0
    %839 = vmatpush1.msra.mxu0 0.0
    %840 = vmatprep.subr.mxu0 0.0
    %841 = vmatpush1.msra.mxu0 0.0
    %842 = vmatprep.subr.mxu0 0.0
    %843 = vmatpush1.msra.mxu0 0.0
    %844 = vmatprep.subr.mxu0 0.0
    %845 = vmatpush1.msra.mxu0 0.0
    %846 = vmatprep.subr.mxu0 0.0
    %847 = vmatpush1.msra.mxu0 0.0
    %848 = vmatprep.subr.mxu0 0.0
    %849 = vmatpush1.msra.mxu0 0.0
    %850 = vmatprep.subr.mxu0 0.0
    %851 = vmatpush1.msra.mxu0 0.0
    %852 = vmatprep.subr.mxu0 0.0
    %853 = vmatpush1.msra.mxu0 0.0
    %854 = vmatprep.subr.mxu0 0.0
    %855 = vmatpush1.msra.mxu0 0.0
    %856 = vmatprep.mubr.f32.mxu0 0.0
    %857 = vmatmul.mubr.f32.gmra.mrb[0].mxu0 %v787
    %v858 = vpop.f32.mrb[0].mxu0
    %v859 = vadd.f32 %v784, %v858
    %v860 = vpop.f32.mrb[0].mxu0
    %861 = vmatprep.mubr.f32.mxu0 0.0
    %862 = vmatmul.mubr.f32.gmra.mrb[0].mxu0 %v790
    %v863 = vpop.f32.mrb[0].mxu0
    %v864 = vadd.f32 %v784, %v863
    %v865 = vpop.f32.mrb[0].mxu0
    %866 = vdwg.mxu0
    %v867 = vmul.f32 %v859, %v859
    %v868 = vmul.f32 %v864, %v864
    %v869 = vmul.f32 %v859, %v867
    %v870 = vmul.f32 %v864, %v868
    %v871 = vmul.f32 %v869, 0.044715
    %v872 = vmul.f32 %v870, 0.044715
    %v873 = vadd.f32 %v859, %v871
    %v874 = vadd.f32 %v864, %v872
    %v875 = vmul.f32 %v873, 0.7978846
    %v876 = vmul.f32 %v874, 0.7978846
    %v877 = vtanh.pop %v875
    %v878 = vtanh.pop %v876
    %v879 = vadd.f32 %v877, 1.0
    %v880 = vadd.f32 %v878, 1.0
    %v881 = vmul.f32 %v879, 0.5
    %v882 = vmul.f32 %v880, 0.5
    %v883 = vmul.f32 %v859, %v881
    %v884 = vmul.f32 %v864, %v882
    %v885 = vlaneseq
    %v886 = vshrl.u32 %v885, 7
    %v887 = vsub.s32 3, %v886
    %v888 = vrot.slane %v73, %v887
    %vm889 = vcmask 523264
    %v891 = vsel %vm889, %v883, 0
    %v894 = vsel %vm889, %v884, 0
    %896 = vmatprep.subr.mxu0 0.0
    %897 = vmatpush1.msra.mxu0 %v65
    %898 = vmatprep.subr.mxu0 0.0
    %899 = vmatpush1.msra.mxu0 %v66
    %900 = vmatprep.subr.mxu0 0.0
    %901 = vmatpush1.msra.mxu0 %v67
    %902 = vmatprep.subr.mxu0 0.0
    %903 = vmatpush1.msra.mxu0 %v68
    %904 = vmatprep.subr.mxu0 0.0
    %905 = vmatpush1.msra.mxu0 %v69
    %906 = vmatprep.subr.mxu0 0.0
    %907 = vmatpush1.msra.mxu0 %v70
    %908 = vmatprep.subr.mxu0 0.0
    %909 = vmatpush1.msra.mxu0 %v71
    %910 = vmatprep.subr.mxu0 0.0
    %911 = vmatpush1.msra.mxu0 %v72
    %912 = vmatprep.subr.mxu0 0.0
    %913 = vmatpush1.msra.mxu0 0.0
    %914 = vmatprep.subr.mxu0 0.0
    %915 = vmatpush1.msra.mxu0 0.0
    %916 = vmatprep.subr.mxu0 0.0
    %917 = vmatpush1.msra.mxu0 0.0
    %918 = vmatprep.subr.mxu0 0.0
    %919 = vmatpush1.msra.mxu0 0.0
    %920 = vmatprep.subr.mxu0 0.0
    %921 = vmatpush1.msra.mxu0 0.0
    %922 = vmatprep.subr.mxu0 0.0
    %923 = vmatpush1.msra.mxu0 0.0
    %924 = vmatprep.subr.mxu0 0.0
    %925 = vmatpush1.msra.mxu0 0.0
    %926 = vmatprep.subr.mxu0 0.0
    %927 = vmatpush1.msra.mxu0 0.0
    %928 = vmatprep.subr.mxu0 0.0
    %929 = vmatpush1.msra.mxu0 0.0
    %930 = vmatprep.subr.mxu0 0.0
    %931 = vmatpush1.msra.mxu0 0.0
    %932 = vmatprep.subr.mxu0 0.0
    %933 = vmatpush1.msra.mxu0 0.0
    %934 = vmatprep.subr.mxu0 0.0
    %935 = vmatpush1.msra.mxu0 0.0
    %936 = vmatprep.subr.mxu0 0.0
    %937 = vmatpush1.msra.mxu0 0.0
    %938 = vmatprep.subr.mxu0 0.0
    %939 = vmatpush1.msra.mxu0 0.0
    %940 = vmatprep.subr.mxu0 0.0
    %941 = vmatpush1.msra.mxu0 0.0
    %942 = vmatprep.subr.mxu0 0.0
    %943 = vmatpush1.msra.mxu0 0.0
    %944 = vmatprep.subr.mxu0 0.0
    %945 = vmatpush1.msra.mxu0 0.0
    %946 = vmatprep.subr.mxu0 0.0
    %947 = vmatpush1.msra.mxu0 0.0
    %948 = vmatprep.subr.mxu0 0.0
    %949 = vmatpush1.msra.mxu0 0.0
    %950 = vmatprep.subr.mxu0 0.0
    %951 = vmatpush1.msra.mxu0 0.0
    %952 = vmatprep.subr.mxu0 0.0
    %953 = vmatpush1.msra.mxu0 0.0
    %954 = vmatprep.subr.mxu0 0.0
    %955 = vmatpush1.msra.mxu0 0.0
    %956 = vmatprep.subr.mxu0 0.0
    %957 = vmatpush1.msra.mxu0 0.0
    %958 = vmatprep.subr.mxu0 0.0
    %959 = vmatpush1.msra.mxu0 0.0
    %960 = vmatprep.mubr.f32.mxu0 0.0
    %961 = vmatmul.mubr.f32.gmra.mrb[0].mxu0 %v891
    %v962 = vpop.f32.mrb[0].mxu0
    %v963 = vadd.f32 %v888, %v962
    %v964 = vpop.f32.mrb[0].mxu0
    %965 = vmatprep.mubr.f32.mxu0 0.0
    %966 = vmatmul.mubr.f32.gmra.mrb[0].mxu0 %v894
    %v967 = vpop.f32.mrb[0].mxu0
    %v968 = vadd.f32 %v888, %v967
    %v969 = vpop.f32.mrb[0].mxu0
    %970 = vdwg.mxu0
    %v971 = vadd.f32 %v778, %v963
    %v972 = vadd.f32 %v779, %v968
    %v973 = vsel %vm80, %v971, 0.0
    %974 = vadd.xlane.f32.xlu0 %v973
    %v975 = vpop.xlane.xlu0 %974
    %v976 = vsel %vm80, %v972, 0.0
    %977 = vadd.xlane.f32.xlu0 %v976
    %v978 = vpop.xlane.xlu0 %977
    %v979 = vmul.f32 %v975, %v747
    %v980 = vmul.f32 %v978, %v747
    %v981 = vsub.f32 %v971, %v979
    %v982 = vsub.f32 %v972, %v980
    %v983 = vmul.f32 %v981, %v981
    %v984 = vmul.f32 %v982, %v982
    %v985 = vsel %vm80, %v983, 0.0
    %986 = vadd.xlane.f32.xlu0 %v985
    %v987 = vpop.xlane.xlu0 %986
    %v988 = vsel %vm80, %v984, 0.0
    %989 = vadd.xlane.f32.xlu0 %v988
    %v990 = vpop.xlane.xlu0 %989
    %v991 = vmul.f32 %v987, %v747
    %v992 = vmul.f32 %v990, %v747
    %v993 = vadd.f32 %v991, 1e-12
    %v994 = vadd.f32 %v992, 1e-12
    %v995 = vrsqrt.pop %v993
    %v996 = vrsqrt.pop %v994
    %v997 = vmul.f32 %v981, %v995
    %v998 = vmul.f32 %v982, %v996
    %v999 = vlaneseq
    %v1000 = vshrl.u32 %v999, 7
    %v1001 = vsub.s32 4, %v1000
    %v1002 = vrot.slane %v73, %v1001
    %v1003 = vmul.f32 %v997, %v1002
    %v1004 = vmul.f32 %v998, %v1002
    %v1005 = vlaneseq
    %v1006 = vshrl.u32 %v1005, 7
    %v1007 = vsub.s32 5, %v1006
    %v1008 = vrot.slane %v73, %v1007
    %v1009 = vadd.f32 %v1003, %v1008
    %v1010 = vadd.f32 %v1004, %v1008
    %s1011 = scalar_lea.vmem %s2, 32
    %v1012 = vld [vmem:[%s1011] sm:$0xff]
    %v1013 = vld [vmem:[%s1011 + $0x8] sm:$0xff]
    %v1014 = vld [vmem:[%s1011 + $0x10] sm:$0xff]
    %v1015 = vld [vmem:[%s1011 + $0x18] sm:$0xff]
    %s1016 = scalar_lea.vmem %s3, 1
    %v1017 = vld [vmem:[%s1016] sm:$0x1]
    %s1018 = scalar_lea.vmem %s4, 32
    %v1019 = vld [vmem:[%s1018] sm:$0xff]
    %v1020 = vld [vmem:[%s1018 + $0x8] sm:$0xff]
    %v1021 = vld [vmem:[%s1018 + $0x10] sm:$0xff]
    %v1022 = vld [vmem:[%s1018 + $0x18] sm:$0xff]
    %s1023 = scalar_lea.vmem %s5, 32
    %v1024 = vld [vmem:[%s1023] sm:$0xff]
    %v1025 = vld [vmem:[%s1023 + $0x8] sm:$0xff]
    %v1026 = vld [vmem:[%s1023 + $0x10] sm:$0xff]
    %v1027 = vld [vmem:[%s1023 + $0x18] sm:$0xff]
    %s1028 = scalar_lea.vmem %s6, 1
    %v1029 = vld [vmem:[%s1028] sm:$0x1]
    %s1030 = scalar_lea.vmem %s7, 64
    %v1031 = vld [vmem:[%s1030] sm:$0xff]
    %v1032 = vld [vmem:[%s1030 + $0x8] sm:$0xff]
    %v1033 = vld [vmem:[%s1030 + $0x10] sm:$0xff]
    %v1034 = vld [vmem:[%s1030 + $0x18] sm:$0xff]
    %v1035 = vld [vmem:[%s1030 + $0x20] sm:$0xff]
    %v1036 = vld [vmem:[%s1030 + $0x28] sm:$0xff]
    %v1037 = vld [vmem:[%s1030 + $0x30] sm:$0xff]
    %v1038 = vld [vmem:[%s1030 + $0x38] sm:$0xff]
    %s1039 = scalar_lea.vmem %s8, 8
    %v1040 = vld [vmem:[%s1039] sm:$0x3f]
    %v1042 = vlaneseq
    %v1043 = vshrl.u32 %v1042, 7
    %v1044 = vsub.s32 0, %v1043
    %v1045 = vrot.slane %v1017, %v1044
    %v1048 = vsel %vm80, %v1009, 0
    %v1051 = vsel %vm80, %v1010, 0
    %1053 = vmatprep.subr.mxu0 0.0
    %1054 = vmatpush1.msra.mxu0 %v1012
    %1055 = vmatprep.subr.mxu0 0.0
    %1056 = vmatpush1.msra.mxu0 %v1013
    %1057 = vmatprep.subr.mxu0 0.0
    %1058 = vmatpush1.msra.mxu0 %v1014
    %1059 = vmatprep.subr.mxu0 0.0
    %1060 = vmatpush1.msra.mxu0 %v1015
    %1061 = vmatprep.subr.mxu0 0.0
    %1062 = vmatpush1.msra.mxu0 0.0
    %1063 = vmatprep.subr.mxu0 0.0
    %1064 = vmatpush1.msra.mxu0 0.0
    %1065 = vmatprep.subr.mxu0 0.0
    %1066 = vmatpush1.msra.mxu0 0.0
    %1067 = vmatprep.subr.mxu0 0.0
    %1068 = vmatpush1.msra.mxu0 0.0
    %1069 = vmatprep.subr.mxu0 0.0
    %1070 = vmatpush1.msra.mxu0 0.0
    %1071 = vmatprep.subr.mxu0 0.0
    %1072 = vmatpush1.msra.mxu0 0.0
    %1073 = vmatprep.subr.mxu0 0.0
    %1074 = vmatpush1.msra.mxu0 0.0
    %1075 = vmatprep.subr.mxu0 0.0
    %1076 = vmatpush1.msra.mxu0 0.0
    %1077 = vmatprep.subr.mxu0 0.0
    %1078 = vmatpush1.msra.mxu0 0.0
    %1079 = vmatprep.subr.mxu0 0.0
    %1080 = vmatpush1.msra.mxu0 0.0
    %1081 = vmatprep.subr.mxu0 0.0
    %1082 = vmatpush1.msra.mxu0 0.0
    %1083 = vmatprep.subr.mxu0 0.0
    %1084 = vmatpush1.msra.mxu0 0.0
    %1085 = vmatprep.subr.mxu0 0.0
    %1086 = vmatpush1.msra.mxu0 0.0
    %1087 = vmatprep.subr.mxu0 0.0
    %1088 = vmatpush1.msra.mxu0 0.0
    %1089 = vmatprep.subr.mxu0 0.0
    %1090 = vmatpush1.msra.mxu0 0.0
    %1091 = vmatprep.subr.mxu0 0.0
    %1092 = vmatpush1.msra.mxu0 0.0
    %1093 = vmatprep.subr.mxu0 0.0
    %1094 = vmatpush1.msra.mxu0 0.0
    %1095 = vmatprep.subr.mxu0 0.0
    %1096 = vmatpush1.msra.mxu0 0.0
    %1097 = vmatprep.subr.mxu0 0.0
    %1098 = vmatpush1.msra.mxu0 0.0
    %1099 = vmatprep.subr.mxu0 0.0
    %1100 = vmatpush1.msra.mxu0 0.0
    %1101 = vmatprep.subr.mxu0 0.0
    %1102 = vmatpush1.msra.mxu0 0.0
    %1103 = vmatprep.subr.mxu0 0.0
    %1104 = vmatpush1.msra.mxu0 0.0
    %1105 = vmatprep.subr.mxu0 0.0
    %1106 = vmatpush1.msra.mxu0 0.0
    %1107 = vmatprep.subr.mxu0 0.0
    %1108 = vmatpush1.msra.mxu0 0.0
    %1109 = vmatprep.subr.mxu0 0.0
    %1110 = vmatpush1.msra.mxu0 0.0
    %1111 = vmatprep.subr.mxu0 0.0
    %1112 = vmatpush1.msra.mxu0 0.0
    %1113 = vmatprep.subr.mxu0 0.0
    %1114 = vmatpush1.msra.mxu0 0.0
    %1115 = vmatprep.subr.mxu0 0.0
    %1116 = vmatpush1.msra.mxu0 0.0
    %1117 = vmatprep.mubr.f32.mxu0 0.0
    %1118 = vmatmul.mubr.f32.gmra.mrb[0].mxu0 %v1048
    %v1119 = vpop.f32.mrb[0].mxu0
    %v1120 = vadd.f32 %v1045, %v1119
    %v1121 = vpop.f32.mrb[0].mxu0
    %1122 = vmatprep.mubr.f32.mxu0 0.0
    %1123 = vmatmul.mubr.f32.gmra.mrb[0].mxu0 %v1051
    %v1124 = vpop.f32.mrb[0].mxu0
    %v1125 = vadd.f32 %v1045, %v1124
    %v1126 = vpop.f32.mrb[0].mxu0
    %1127 = vdwg.mxu0
    %v1128 = vlaneseq
    %v1129 = vshrl.u32 %v1128, 7
    %v1130 = vsub.s32 0, %v1129
    %v1131 = vrot.slane %v1040, %v1130
    %1134 = vrot.lane.b32.xlu0 %v1120, 96
    %v1135 = vpop.permute.xlu0 %1134
    %1136 = vrot.lane.b32.xlu0 %v1125, 96
    %v1137 = vpop.permute.xlu0 %1136
    %v1138 = vsel %vm172, %v1120, 0
    %v1140 = vsel %vm172, %v1125, 0
    %v1142 = vsel %vm172, %v1135, 0
    %v1144 = vsel %vm172, %v1137, 0
    %1146 = vmatprep.subr.mxu0 0.0
    %1147 = vmatpush1.xpose.msra.mxu0 %v1142
    %1148 = vmatprep.subr.mxu0 0.0
    %1149 = vmatpush1.xpose.msra.mxu0 %v1144
    %1150 = vmatprep.subr.mxu0 0.0
    %1151 = vmatpush1.xpose.msra.mxu0 0.0
    %1152 = vmatprep.subr.mxu0 0.0
    %1153 = vmatpush1.xpose.msra.mxu0 0.0
    %1154 = vmatprep.subr.mxu0 0.0
    %1155 = vmatpush1.xpose.msra.mxu0 0.0
    %1156 = vmatprep.subr.mxu0 0.0
    %1157 = vmatpush1.xpose.msra.mxu0 0.0
    %1158 = vmatprep.subr.mxu0 0.0
    %1159 = vmatpush1.xpose.msra.mxu0 0.0
    %1160 = vmatprep.subr.mxu0 0.0
    %1161 = vmatpush1.xpose.msra.mxu0 0.0
    %1162 = vmatprep.subr.mxu0 0.0
    %1163 = vmatpush1.xpose.msra.mxu0 0.0
    %1164 = vmatprep.subr.mxu0 0.0
    %1165 = vmatpush1.xpose.msra.mxu0 0.0
    %1166 = vmatprep.subr.mxu0 0.0
    %1167 = vmatpush1.xpose.msra.mxu0 0.0
    %1168 = vmatprep.subr.mxu0 0.0
    %1169 = vmatpush1.xpose.msra.mxu0 0.0
    %1170 = vmatprep.subr.mxu0 0.0
    %1171 = vmatpush1.xpose.msra.mxu0 0.0
    %1172 = vmatprep.subr.mxu0 0.0
    %1173 = vmatpush1.xpose.msra.mxu0 0.0
    %1174 = vmatprep.subr.mxu0 0.0
    %1175 = vmatpush1.xpose.msra.mxu0 0.0
    %1176 = vmatprep.subr.mxu0 0.0
    %1177 = vmatpush1.xpose.msra.mxu0 0.0
    %1178 = vmatprep.subr.mxu0 0.0
    %1179 = vmatpush1.xpose.msra.mxu0 0.0
    %1180 = vmatprep.subr.mxu0 0.0
    %1181 = vmatpush1.xpose.msra.mxu0 0.0
    %1182 = vmatprep.subr.mxu0 0.0
    %1183 = vmatpush1.xpose.msra.mxu0 0.0
    %1184 = vmatprep.subr.mxu0 0.0
    %1185 = vmatpush1.xpose.msra.mxu0 0.0
    %1186 = vmatprep.subr.mxu0 0.0
    %1187 = vmatpush1.xpose.msra.mxu0 0.0
    %1188 = vmatprep.subr.mxu0 0.0
    %1189 = vmatpush1.xpose.msra.mxu0 0.0
    %1190 = vmatprep.subr.mxu0 0.0
    %1191 = vmatpush1.xpose.msra.mxu0 0.0
    %1192 = vmatprep.subr.mxu0 0.0
    %1193 = vmatpush1.xpose.msra.mxu0 0.0
    %1194 = vmatprep.subr.mxu0 0.0
    %1195 = vmatpush1.xpose.msra.mxu0 0.0
    %1196 = vmatprep.subr.mxu0 0.0
    %1197 = vmatpush1.xpose.msra.mxu0 0.0
    %1198 = vmatprep.subr.mxu0 0.0
    %1199 = vmatpush1.xpose.msra.mxu0 0.0
    %1200 = vmatprep.subr.mxu0 0.0
    %1201 = vmatpush1.xpose.msra.mxu0 0.0
    %1202 = vmatprep.subr.mxu0 0.0
    %1203 = vmatpush1.xpose.msra.mxu0 0.0
    %1204 = vmatprep.subr.mxu0 0.0
    %1205 = vmatpush1.xpose.msra.mxu0 0.0
    %1206 = vmatprep.subr.mxu0 0.0
    %1207 = vmatpush1.xpose.msra.mxu0 0.0
    %1208 = vmatprep.subr.mxu0 0.0
    %1209 = vmatpush1.xpose.msra.mxu0 0.0
    %1210 = vmatprep.mubr.f32.mxu0 0.0
    %1211 = vmatmul.mubr.f32.gmra.mrb[0].mxu0 %v1138
    %v1212 = vpop.f32.mrb[0].mxu0
    %v1213 = vadd.f32 0.0, %v1212
    %v1214 = vpop.f32.mrb[0].mxu0
    %1215 = vmatprep.mubr.f32.mxu0 0.0
    %1216 = vmatmul.mubr.f32.gmra.mrb[0].mxu0 %v1140
    %v1217 = vpop.f32.mrb[0].mxu0
    %v1218 = vadd.f32 0.0, %v1217
    %v1219 = vpop.f32.mrb[0].mxu0
    %1220 = vdwg.mxu0
    %v1221 = vmul.f32 %v1213, 0.25
    %v1222 = vmul.f32 %v1218, 0.25
    %v1223 = vadd.f32 %v1221, %v49
    %v1224 = vadd.f32 %v1222, %v50
    %v1225 = vsel %vm172, %v1223, -inf
    %1226 = vmax.xlane.f32.xlu0 %v1225
    %v1227 = vpop.xlane.xlu0 %1226
    %v1228 = vsel %vm172, %v1224, -inf
    %1229 = vmax.xlane.f32.xlu0 %v1228
    %v1230 = vpop.xlane.xlu0 %1229
    %v1231 = vsub.f32 %v1223, %v1227
    %v1232 = vsub.f32 %v1224, %v1230
    %v1233 = vmul.f32 %v1231, 1.442695
    %v1234 = vpow.pop %v1233
    %v1235 = vmul.f32 %v1232, 1.442695
    %v1236 = vpow.pop %v1235
    %v1237 = vsel %vm172, %v1234, 0.0
    %1238 = vadd.xlane.f32.xlu0 %v1237
    %v1239 = vpop.xlane.xlu0 %1238
    %v1240 = vsel %vm172, %v1236, 0.0
    %1241 = vadd.xlane.f32.xlu0 %v1240
    %v1242 = vpop.xlane.xlu0 %1241
    %v1243 = vrcp.pop %v1239
    %v1244 = vrcp.pop %v1242
    %v1245 = vmul.f32 %v1234, %v1243
    %v1246 = vmul.f32 %v1236, %v1244
    %1247 = vrot.lane.b32.xlu0 %v1120, 64
    %v1248 = vpop.permute.xlu0 %1247
    %1249 = vrot.lane.b32.xlu0 %v1125, 64
    %v1250 = vpop.permute.xlu0 %1249
    %v1254 = vsel %vm172, %v1245, 0
    %v1257 = vsel %vm172, %v1246, 0
    %1259 = vmatprep.subr.mxu0 0.0
    %1260 = vmatpush1.msra.mxu0 %v1248
    %1261 = vmatprep.subr.mxu0 0.0
    %1262 = vmatpush1.msra.mxu0 %v1250
    %1263 = vmatprep.subr.mxu0 0.0
    %1264 = vmatpush1.msra.mxu0 0.0
    %1265 = vmatprep.subr.mxu0 0.0
    %1266 = vmatpush1.msra.mxu0 0.0
    %1267 = vmatprep.subr.mxu0 0.0
    %1268 = vmatpush1.msra.mxu0 0.0
    %1269 = vmatprep.subr.mxu0 0.0
    %1270 = vmatpush1.msra.mxu0 0.0
    %1271 = vmatprep.subr.mxu0 0.0
    %1272 = vmatpush1.msra.mxu0 0.0
    %1273 = vmatprep.subr.mxu0 0.0
    %1274 = vmatpush1.msra.mxu0 0.0
    %1275 = vmatprep.subr.mxu0 0.0
    %1276 = vmatpush1.msra.mxu0 0.0
    %1277 = vmatprep.subr.mxu0 0.0
    %1278 = vmatpush1.msra.mxu0 0.0
    %1279 = vmatprep.subr.mxu0 0.0
    %1280 = vmatpush1.msra.mxu0 0.0
    %1281 = vmatprep.subr.mxu0 0.0
    %1282 = vmatpush1.msra.mxu0 0.0
    %1283 = vmatprep.subr.mxu0 0.0
    %1284 = vmatpush1.msra.mxu0 0.0
    %1285 = vmatprep.subr.mxu0 0.0
    %1286 = vmatpush1.msra.mxu0 0.0
    %1287 = vmatprep.subr.mxu0 0.0
    %1288 = vmatpush1.msra.mxu0 0.0
    %1289 = vmatprep.subr.mxu0 0.0
    %1290 = vmatpush1.msra.mxu0 0.0
    %1291 = vmatprep.subr.mxu0 0.0
    %1292 = vmatpush1.msra.mxu0 0.0
    %1293 = vmatprep.subr.mxu0 0.0
    %1294 = vmatpush1.msra.mxu0 0.0
    %1295 = vmatprep.subr.mxu0 0.0
    %1296 = vmatpush1.msra.mxu0 0.0
    %1297 = vmatprep.subr.mxu0 0.0
    %1298 = vmatpush1.msra.mxu0 0.0
    %1299 = vmatprep.subr.mxu0 0.0
    %1300 = vmatpush1.msra.mxu0 0.0
    %1301 = vmatprep.subr.mxu0 0.0
    %1302 = vmatpush1.msra.mxu0 0.0
    %1303 = vmatprep.subr.mxu0 0.0
    %1304 = vmatpush1.msra.mxu0 0.0
    %1305 = vmatprep.subr.mxu0 0.0
    %1306 = vmatpush1.msra.mxu0 0.0
    %1307 = vmatprep.subr.mxu0 0.0
    %1308 = vmatpush1.msra.mxu0 0.0
    %1309 = vmatprep.subr.mxu0 0.0
    %1310 = vmatpush1.msra.mxu0 0.0
    %1311 = vmatprep.subr.mxu0 0.0
    %1312 = vmatpush1.msra.mxu0 0.0
    %1313 = vmatprep.subr.mxu0 0.0
    %1314 = vmatpush1.msra.mxu0 0.0
    %1315 = vmatprep.subr.mxu0 0.0
    %1316 = vmatpush1.msra.mxu0 0.0
    %1317 = vmatprep.subr.mxu0 0.0
    %1318 = vmatpush1.msra.mxu0 0.0
    %1319 = vmatprep.subr.mxu0 0.0
    %1320 = vmatpush1.msra.mxu0 0.0
    %1321 = vmatprep.subr.mxu0 0.0
    %1322 = vmatpush1.msra.mxu0 0.0
    %1323 = vmatprep.mubr.f32.mxu0 0.0
    %1324 = vmatmul.mubr.f32.gmra.mrb[0].mxu0 %v1254
    %v1325 = vpop.f32.mrb[0].mxu0
    %v1326 = vadd.f32 0.0, %v1325
    %v1327 = vpop.f32.mrb[0].mxu0
    %1328 = vmatprep.mubr.f32.mxu0 0.0
    %1329 = vmatmul.mubr.f32.gmra.mrb[0].mxu0 %v1257
    %v1330 = vpop.f32.mrb[0].mxu0
    %v1331 = vadd.f32 0.0, %v1330
    %v1332 = vpop.f32.mrb[0].mxu0
    %1333 = vdwg.mxu0
    %v1335 = vsel %vm172, %v1326, 0
    %v1338 = vsel %vm172, %v1331, 0
    %1340 = vmatprep.subr.mxu0 0.0
    %1341 = vmatpush1.msra.mxu0 %v1019
    %1342 = vmatprep.subr.mxu0 0.0
    %1343 = vmatpush1.msra.mxu0 %v1020
    %1344 = vmatprep.subr.mxu0 0.0
    %1345 = vmatpush1.msra.mxu0 0.0
    %1346 = vmatprep.subr.mxu0 0.0
    %1347 = vmatpush1.msra.mxu0 0.0
    %1348 = vmatprep.subr.mxu0 0.0
    %1349 = vmatpush1.msra.mxu0 0.0
    %1350 = vmatprep.subr.mxu0 0.0
    %1351 = vmatpush1.msra.mxu0 0.0
    %1352 = vmatprep.subr.mxu0 0.0
    %1353 = vmatpush1.msra.mxu0 0.0
    %1354 = vmatprep.subr.mxu0 0.0
    %1355 = vmatpush1.msra.mxu0 0.0
    %1356 = vmatprep.subr.mxu0 0.0
    %1357 = vmatpush1.msra.mxu0 0.0
    %1358 = vmatprep.subr.mxu0 0.0
    %1359 = vmatpush1.msra.mxu0 0.0
    %1360 = vmatprep.subr.mxu0 0.0
    %1361 = vmatpush1.msra.mxu0 0.0
    %1362 = vmatprep.subr.mxu0 0.0
    %1363 = vmatpush1.msra.mxu0 0.0
    %1364 = vmatprep.subr.mxu0 0.0
    %1365 = vmatpush1.msra.mxu0 0.0
    %1366 = vmatprep.subr.mxu0 0.0
    %1367 = vmatpush1.msra.mxu0 0.0
    %1368 = vmatprep.subr.mxu0 0.0
    %1369 = vmatpush1.msra.mxu0 0.0
    %1370 = vmatprep.subr.mxu0 0.0
    %1371 = vmatpush1.msra.mxu0 0.0
    %1372 = vmatprep.subr.mxu0 0.0
    %1373 = vmatpush1.msra.mxu0 0.0
    %1374 = vmatprep.subr.mxu0 0.0
    %1375 = vmatpush1.msra.mxu0 0.0
    %1376 = vmatprep.subr.mxu0 0.0
    %1377 = vmatpush1.msra.mxu0 0.0
    %1378 = vmatprep.subr.mxu0 0.0
    %1379 = vmatpush1.msra.mxu0 0.0
    %1380 = vmatprep.subr.mxu0 0.0
    %1381 = vmatpush1.msra.mxu0 0.0
    %1382 = vmatprep.subr.mxu0 0.0
    %1383 = vmatpush1.msra.mxu0 0.0
    %1384 = vmatprep.subr.mxu0 0.0
    %1385 = vmatpush1.msra.mxu0 0.0
    %1386 = vmatprep.subr.mxu0 0.0
    %1387 = vmatpush1.msra.mxu0 0.0
    %1388 = vmatprep.subr.mxu0 0.0
    %1389 = vmatpush1.msra.mxu0 0.0
    %1390 = vmatprep.subr.mxu0 0.0
    %1391 = vmatpush1.msra.mxu0 0.0
    %1392 = vmatprep.subr.mxu0 0.0
    %1393 = vmatpush1.msra.mxu0 0.0
    %1394 = vmatprep.subr.mxu0 0.0
    %1395 = vmatpush1.msra.mxu0 0.0
    %1396 = vmatprep.subr.mxu0 0.0
    %1397 = vmatpush1.msra.mxu0 0.0
    %1398 = vmatprep.subr.mxu0 0.0
    %1399 = vmatpush1.msra.mxu0 0.0
    %1400 = vmatprep.subr.mxu0 0.0
    %1401 = vmatpush1.msra.mxu0 0.0
    %1402 = vmatprep.subr.mxu0 0.0
    %1403 = vmatpush1.msra.mxu0 0.0
    %1404 = vmatprep.mubr.f32.mxu0 0.0
    %1405 = vmatmul.mubr.f32.gmra.mrb[0].mxu0 %v1335
    %v1406 = vpop.f32.mrb[0].mxu0
    %v1407 = vadd.f32 0.0, %v1406
    %v1408 = vpop.f32.mrb[0].mxu0
    %1409 = vmatprep.mubr.f32.mxu0 0.0
    %1410 = vmatmul.mubr.f32.gmra.mrb[0].mxu0 %v1338
    %v1411 = vpop.f32.mrb[0].mxu0
    %v1412 = vadd.f32 0.0, %v1411
    %v1413 = vpop.f32.mrb[0].mxu0
    %1414 = vdwg.mxu0
    %v1415 = vadd.f32 %v1131, %v1407
    %v1416 = vadd.f32 %v1131, %v1412
    %1417 = vrot.lane.b32.xlu0 %v1120, 112
    %v1418 = vpop.permute.xlu0 %1417
    %1419 = vrot.lane.b32.xlu0 %v1125, 112
    %v1420 = vpop.permute.xlu0 %1419
    %1421 = vrot.lane.b32.xlu0 %v1120, 80
    %v1422 = vpop.permute.xlu0 %1421
    %1423 = vrot.lane.b32.xlu0 %v1125, 80
    %v1424 = vpop.permute.xlu0 %1423
    %v1425 = vsel %vm172, %v1418, 0
    %v1427 = vsel %vm172, %v1420, 0
    %v1429 = vsel %vm172, %v1422, 0
    %v1431 = vsel %vm172, %v1424, 0
    %1433 = vmatprep.subr.mxu0 0.0
    %1434 = vmatpush1.xpose.msra.mxu0 %v1429
    %1435 = vmatprep.subr.mxu0 0.0
    %1436 = vmatpush1.xpose.msra.mxu0 %v1431
    %1437 = vmatprep.subr.mxu0 0.0
    %1438 = vmatpush1.xpose.msra.mxu0 0.0
    %1439 = vmatprep.subr.mxu0 0.0
    %1440 = vmatpush1.xpose.msra.mxu0 0.0
    %1441 = vmatprep.subr.mxu0 0.0
    %1442 = vmatpush1.xpose.msra.mxu0 0.0
    %1443 = vmatprep.subr.mxu0 0.0
    %1444 = vmatpush1.xpose.msra.mxu0 0.0
    %1445 = vmatprep.subr.mxu0 0.0
    %1446 = vmatpush1.xpose.msra.mxu0 0.0
    %1447 = vmatprep.subr.mxu0 0.0
    %1448 = vmatpush1.xpose.msra.mxu0 0.0
    %1449 = vmatprep.subr.mxu0 0.0
    %1450 = vmatpush1.xpose.msra.mxu0 0.0
    %1451 = vmatprep.subr.mxu0 0.0
    %1452 = vmatpush1.xpose.msra.mxu0 0.0
    %1453 = vmatprep.subr.mxu0 0.0
    %1454 = vmatpush1.xpose.msra.mxu0 0.0
    %1455 = vmatprep.subr.mxu0 0.0
    %1456 = vmatpush1.xpose.msra.mxu0 0.0
    %1457 = vmatprep.subr.mxu0 0.0
    %1458 = vmatpush1.xpose.msra.mxu0 0.0
    %1459 = vmatprep.subr.mxu0 0.0
    %1460 = vmatpush1.xpose.msra.mxu0 0.0
    %1461 = vmatprep.subr.mxu0 0.0
    %1462 = vmatpush1.xpose.msra.mxu0 0.0
    %1463 = vmatprep.subr.mxu0 0.0
    %1464 = vmatpush1.xpose.msra.mxu0 0.0
    %1465 = vmatprep.subr.mxu0 0.0
    %1466 = vmatpush1.xpose.msra.mxu0 0.0
    %1467 = vmatprep.subr.mxu0 0.0
    %1468 = vmatpush1.xpose.msra.mxu0 0.0
    %1469 = vmatprep.subr.mxu0 0.0
    %1470 = vmatpush1.xpose.msra.mxu0 0.0
    %1471 = vmatprep.subr.mxu0 0.0
    %1472 = vmatpush1.xpose.msra.mxu0 0.0
    %1473 = vmatprep.subr.mxu0 0.0
    %1474 = vmatpush1.xpose.msra.mxu0 0.0
    %1475 = vmatprep.subr.mxu0 0.0
    %1476 = vmatpush1.xpose.msra.mxu0 0.0
    %1477 = vmatprep.subr.mxu0 0.0
    %1478 = vmatpush1.xpose.msra.mxu0 0.0
    %1479 = vmatprep.subr.mxu0 0.0
    %1480 = vmatpush1.xpose.msra.mxu0 0.0
    %1481 = vmatprep.subr.mxu0 0.0
    %1482 = vmatpush1.xpose.msra.mxu0 0.0
    %1483 = vmatprep.subr.mxu0 0.0
    %1484 = vmatpush1.xpose.msra.mxu0 0.0
    %1485 = vmatprep.subr.mxu0 0.0
    %1486 = vmatpush1.xpose.msra.mxu0 0.0
    %1487 = vmatprep.subr.mxu0 0.0
    %1488 = vmatpush1.xpose.msra.mxu0 0.0
    %1489 = vmatprep.subr.mxu0 0.0
    %1490 = vmatpush1.xpose.msra.mxu0 0.0
    %1491 = vmatprep.subr.mxu0 0.0
    %1492 = vmatpush1.xpose.msra.mxu0 0.0
    %1493 = vmatprep.subr.mxu0 0.0
    %1494 = vmatpush1.xpose.msra.mxu0 0.0
    %1495 = vmatprep.subr.mxu0 0.0
    %1496 = vmatpush1.xpose.msra.mxu0 0.0
    %1497 = vmatprep.mubr.f32.mxu0 0.0
    %1498 = vmatmul.mubr.f32.gmra.mrb[0].mxu0 %v1425
    %v1499 = vpop.f32.mrb[0].mxu0
    %v1500 = vadd.f32 0.0, %v1499
    %v1501 = vpop.f32.mrb[0].mxu0
    %1502 = vmatprep.mubr.f32.mxu0 0.0
    %1503 = vmatmul.mubr.f32.gmra.mrb[0].mxu0 %v1427
    %v1504 = vpop.f32.mrb[0].mxu0
    %v1505 = vadd.f32 0.0, %v1504
    %v1506 = vpop.f32.mrb[0].mxu0
    %1507 = vdwg.mxu0
    %v1508 = vmul.f32 %v1500, 0.25
    %v1509 = vmul.f32 %v1505, 0.25
    %v1510 = vadd.f32 %v1508, %v49
    %v1511 = vadd.f32 %v1509, %v50
    %v1512 = vsel %vm172, %v1510, -inf
    %1513 = vmax.xlane.f32.xlu0 %v1512
    %v1514 = vpop.xlane.xlu0 %1513
    %v1515 = vsel %vm172, %v1511, -inf
    %1516 = vmax.xlane.f32.xlu0 %v1515
    %v1517 = vpop.xlane.xlu0 %1516
    %v1518 = vsub.f32 %v1510, %v1514
    %v1519 = vsub.f32 %v1511, %v1517
    %v1520 = vmul.f32 %v1518, 1.442695
    %v1521 = vpow.pop %v1520
    %v1522 = vmul.f32 %v1519, 1.442695
    %v1523 = vpow.pop %v1522
    %v1524 = vsel %vm172, %v1521, 0.0
    %1525 = vadd.xlane.f32.xlu0 %v1524
    %v1526 = vpop.xlane.xlu0 %1525
    %v1527 = vsel %vm172, %v1523, 0.0
    %1528 = vadd.xlane.f32.xlu0 %v1527
    %v1529 = vpop.xlane.xlu0 %1528
    %v1530 = vrcp.pop %v1526
    %v1531 = vrcp.pop %v1529
    %v1532 = vmul.f32 %v1521, %v1530
    %v1533 = vmul.f32 %v1523, %v1531
    %1534 = vrot.lane.b32.xlu0 %v1120, 48
    %v1535 = vpop.permute.xlu0 %1534
    %1536 = vrot.lane.b32.xlu0 %v1125, 48
    %v1537 = vpop.permute.xlu0 %1536
    %v1541 = vsel %vm172, %v1532, 0
    %v1544 = vsel %vm172, %v1533, 0
    %1546 = vmatprep.subr.mxu0 0.0
    %1547 = vmatpush1.msra.mxu0 %v1535
    %1548 = vmatprep.subr.mxu0 0.0
    %1549 = vmatpush1.msra.mxu0 %v1537
    %1550 = vmatprep.subr.mxu0 0.0
    %1551 = vmatpush1.msra.mxu0 0.0
    %1552 = vmatprep.subr.mxu0 0.0
    %1553 = vmatpush1.msra.mxu0 0.0
    %1554 = vmatprep.subr.mxu0 0.0
    %1555 = vmatpush1.msra.mxu0 0.0
    %1556 = vmatprep.subr.mxu0 0.0
    %1557 = vmatpush1.msra.mxu0 0.0
    %1558 = vmatprep.subr.mxu0 0.0
    %1559 = vmatpush1.msra.mxu0 0.0
    %1560 = vmatprep.subr.mxu0 0.0
    %1561 = vmatpush1.msra.mxu0 0.0
    %1562 = vmatprep.subr.mxu0 0.0
    %1563 = vmatpush1.msra.mxu0 0.0
    %1564 = vmatprep.subr.mxu0 0.0
    %1565 = vmatpush1.msra.mxu0 0.0
    %1566 = vmatprep.subr.mxu0 0.0
    %1567 = vmatpush1.msra.mxu0 0.0
    %1568 = vmatprep.subr.mxu0 0.0
    %1569 = vmatpush1.msra.mxu0 0.0
    %1570 = vmatprep.subr.mxu0 0.0
    %1571 = vmatpush1.msra.mxu0 0.0
    %1572 = vmatprep.subr.mxu0 0.0
    %1573 = vmatpush1.msra.mxu0 0.0
    %1574 = vmatprep.subr.mxu0 0.0
    %1575 = vmatpush1.msra.mxu0 0.0
    %1576 = vmatprep.subr.mxu0 0.0
    %1577 = vmatpush1.msra.mxu0 0.0
    %1578 = vmatprep.subr.mxu0 0.0
    %1579 = vmatpush1.msra.mxu0 0.0
    %1580 = vmatprep.subr.mxu0 0.0
    %1581 = vmatpush1.msra.mxu0 0.0
    %1582 = vmatprep.subr.mxu0 0.0
    %1583 = vmatpush1.msra.mxu0 0.0
    %1584 = vmatprep.subr.mxu0 0.0
    %1585 = vmatpush1.msra.mxu0 0.0
    %1586 = vmatprep.subr.mxu0 0.0
    %1587 = vmatpush1.msra.mxu0 0.0
    %1588 = vmatprep.subr.mxu0 0.0
    %1589 = vmatpush1.msra.mxu0 0.0
    %1590 = vmatprep.subr.mxu0 0.0
    %1591 = vmatpush1.msra.mxu0 0.0
    %1592 = vmatprep.subr.mxu0 0.0
    %1593 = vmatpush1.msra.mxu0 0.0
    %1594 = vmatprep.subr.mxu0 0.0
    %1595 = vmatpush1.msra.mxu0 0.0
    %1596 = vmatprep.subr.mxu0 0.0
    %1597 = vmatpush1.msra.mxu0 0.0
    %1598 = vmatprep.subr.mxu0 0.0
    %1599 = vmatpush1.msra.mxu0 0.0
    %1600 = vmatprep.subr.mxu0 0.0
    %1601 = vmatpush1.msra.mxu0 0.0
    %1602 = vmatprep.subr.mxu0 0.0
    %1603 = vmatpush1.msra.mxu0 0.0
    %1604 = vmatprep.subr.mxu0 0.0
    %1605 = vmatpush1.msra.mxu0 0.0
    %1606 = vmatprep.subr.mxu0 0.0
    %1607 = vmatpush1.msra.mxu0 0.0
    %1608 = vmatprep.subr.mxu0 0.0
    %1609 = vmatpush1.msra.mxu0 0.0
    %1610 = vmatprep.mubr.f32.mxu0 0.0
    %1611 = vmatmul.mubr.f32.gmra.mrb[0].mxu0 %v1541
    %v1612 = vpop.f32.mrb[0].mxu0
    %v1613 = vadd.f32 0.0, %v1612
    %v1614 = vpop.f32.mrb[0].mxu0
    %1615 = vmatprep.mubr.f32.mxu0 0.0
    %1616 = vmatmul.mubr.f32.gmra.mrb[0].mxu0 %v1544
    %v1617 = vpop.f32.mrb[0].mxu0
    %v1618 = vadd.f32 0.0, %v1617
    %v1619 = vpop.f32.mrb[0].mxu0
    %1620 = vdwg.mxu0
    %v1622 = vsel %vm172, %v1613, 0
    %v1625 = vsel %vm172, %v1618, 0
    %1627 = vmatprep.subr.mxu0 0.0
    %1628 = vmatpush1.msra.mxu0 %v1021
    %1629 = vmatprep.subr.mxu0 0.0
    %1630 = vmatpush1.msra.mxu0 %v1022
    %1631 = vmatprep.subr.mxu0 0.0
    %1632 = vmatpush1.msra.mxu0 0.0
    %1633 = vmatprep.subr.mxu0 0.0
    %1634 = vmatpush1.msra.mxu0 0.0
    %1635 = vmatprep.subr.mxu0 0.0
    %1636 = vmatpush1.msra.mxu0 0.0
    %1637 = vmatprep.subr.mxu0 0.0
    %1638 = vmatpush1.msra.mxu0 0.0
    %1639 = vmatprep.subr.mxu0 0.0
    %1640 = vmatpush1.msra.mxu0 0.0
    %1641 = vmatprep.subr.mxu0 0.0
    %1642 = vmatpush1.msra.mxu0 0.0
    %1643 = vmatprep.subr.mxu0 0.0
    %1644 = vmatpush1.msra.mxu0 0.0
    %1645 = vmatprep.subr.mxu0 0.0
    %1646 = vmatpush1.msra.mxu0 0.0
    %1647 = vmatprep.subr.mxu0 0.0
    %1648 = vmatpush1.msra.mxu0 0.0
    %1649 = vmatprep.subr.mxu0 0.0
    %1650 = vmatpush1.msra.mxu0 0.0
    %1651 = vmatprep.subr.mxu0 0.0
    %1652 = vmatpush1.msra.mxu0 0.0
    %1653 = vmatprep.subr.mxu0 0.0
    %1654 = vmatpush1.msra.mxu0 0.0
    %1655 = vmatprep.subr.mxu0 0.0
    %1656 = vmatpush1.msra.mxu0 0.0
    %1657 = vmatprep.subr.mxu0 0.0
    %1658 = vmatpush1.msra.mxu0 0.0
    %1659 = vmatprep.subr.mxu0 0.0
    %1660 = vmatpush1.msra.mxu0 0.0
    %1661 = vmatprep.subr.mxu0 0.0
    %1662 = vmatpush1.msra.mxu0 0.0
    %1663 = vmatprep.subr.mxu0 0.0
    %1664 = vmatpush1.msra.mxu0 0.0
    %1665 = vmatprep.subr.mxu0 0.0
    %1666 = vmatpush1.msra.mxu0 0.0
    %1667 = vmatprep.subr.mxu0 0.0
    %1668 = vmatpush1.msra.mxu0 0.0
    %1669 = vmatprep.subr.mxu0 0.0
    %1670 = vmatpush1.msra.mxu0 0.0
    %1671 = vmatprep.subr.mxu0 0.0
    %1672 = vmatpush1.msra.mxu0 0.0
    %1673 = vmatprep.subr.mxu0 0.0
    %1674 = vmatpush1.msra.mxu0 0.0
    %1675 = vmatprep.subr.mxu0 0.0
    %1676 = vmatpush1.msra.mxu0 0.0
    %1677 = vmatprep.subr.mxu0 0.0
    %1678 = vmatpush1.msra.mxu0 0.0
    %1679 = vmatprep.subr.mxu0 0.0
    %1680 = vmatpush1.msra.mxu0 0.0
    %1681 = vmatprep.subr.mxu0 0.0
    %1682 = vmatpush1.msra.mxu0 0.0
    %1683 = vmatprep.subr.mxu0 0.0
    %1684 = vmatpush1.msra.mxu0 0.0
    %1685 = vmatprep.subr.mxu0 0.0
    %1686 = vmatpush1.msra.mxu0 0.0
    %1687 = vmatprep.subr.mxu0 0.0
    %1688 = vmatpush1.msra.mxu0 0.0
    %1689 = vmatprep.subr.mxu0 0.0
    %1690 = vmatpush1.msra.mxu0 0.0
    %1691 = vmatprep.mubr.f32.mxu0 0.0
    %1692 = vmatmul.mubr.f32.gmra.mrb[0].mxu0 %v1622
    %v1693 = vpop.f32.mrb[0].mxu0
    %v1694 = vadd.f32 0.0, %v1693
    %v1695 = vpop.f32.mrb[0].mxu0
    %1696 = vmatprep.mubr.f32.mxu0 0.0
    %1697 = vmatmul.mubr.f32.gmra.mrb[0].mxu0 %v1625
    %v1698 = vpop.f32.mrb[0].mxu0
    %v1699 = vadd.f32 0.0, %v1698
    %v1700 = vpop.f32.mrb[0].mxu0
    %1701 = vdwg.mxu0
    %v1702 = vadd.f32 %v1415, %v1694
    %v1703 = vadd.f32 %v1416, %v1699
    %v1704 = vadd.f32 %v1009, %v1702
    %v1705 = vadd.f32 %v1010, %v1703
    %v1706 = vsel %vm80, %v1704, 0.0
    %1707 = vadd.xlane.f32.xlu0 %v1706
    %v1708 = vpop.xlane.xlu0 %1707
    %v1709 = vsel %vm80, %v1705, 0.0
    %1710 = vadd.xlane.f32.xlu0 %v1709
    %v1711 = vpop.xlane.xlu0 %1710
    %v1712 = vmul.f32 %v1708, %v747
    %v1713 = vmul.f32 %v1711, %v747
    %v1714 = vsub.f32 %v1704, %v1712
    %v1715 = vsub.f32 %v1705, %v1713
    %v1716 = vmul.f32 %v1714, %v1714
    %v1717 = vmul.f32 %v1715, %v1715
    %v1718 = vsel %vm80, %v1716, 0.0
    %1719 = vadd.xlane.f32.xlu0 %v1718
    %v1720 = vpop.xlane.xlu0 %1719
    %v1721 = vsel %vm80, %v1717, 0.0
    %1722 = vadd.xlane.f32.xlu0 %v1721
    %v1723 = vpop.xlane.xlu0 %1722
    %v1724 = vmul.f32 %v1720, %v747
    %v1725 = vmul.f32 %v1723, %v747
    %v1726 = vadd.f32 %v1724, 1e-12
    %v1727 = vadd.f32 %v1725, 1e-12
    %v1728 = vrsqrt.pop %v1726
    %v1729 = vrsqrt.pop %v1727
    %v1730 = vmul.f32 %v1714, %v1728
    %v1731 = vmul.f32 %v1715, %v1729
    %v1732 = vlaneseq
    %v1733 = vshrl.u32 %v1732, 7
    %v1734 = vsub.s32 1, %v1733
    %v1735 = vrot.slane %v1040, %v1734
    %v1736 = vmul.f32 %v1730, %v1735
    %v1737 = vmul.f32 %v1731, %v1735
    %v1738 = vlaneseq
    %v1739 = vshrl.u32 %v1738, 7
    %v1740 = vsub.s32 2, %v1739
    %v1741 = vrot.slane %v1040, %v1740
    %v1742 = vadd.f32 %v1736, %v1741
    %v1743 = vadd.f32 %v1737, %v1741
    %v1745 = vlaneseq
    %v1746 = vshrl.u32 %v1745, 7
    %v1747 = vsub.s32 0, %v1746
    %v1748 = vrot.slane %v1029, %v1747
    %v1751 = vsel %vm80, %v1742, 0
    %v1754 = vsel %vm80, %v1743, 0
    %1756 = vmatprep.subr.mxu0 0.0
    %1757 = vmatpush1.msra.mxu0 %v1024
    %1758 = vmatprep.subr.mxu0 0.0
    %1759 = vmatpush1.msra.mxu0 %v1025
    %1760 = vmatprep.subr.mxu0 0.0
    %1761 = vmatpush1.msra.mxu0 %v1026
    %1762 = vmatprep.subr.mxu0 0.0
    %1763 = vmatpush1.msra.mxu0 %v1027
    %1764 = vmatprep.subr.mxu0 0.0
    %1765 = vmatpush1.msra.mxu0 0.0
    %1766 = vmatprep.subr.mxu0 0.0
    %1767 = vmatpush1.msra.mxu0 0.0
    %1768 = vmatprep.subr.mxu0 0.0
    %1769 = vmatpush1.msra.mxu0 0.0
    %1770 = vmatprep.subr.mxu0 0.0
    %1771 = vmatpush1.msra.mxu0 0.0
    %1772 = vmatprep.subr.mxu0 0.0
    %1773 = vmatpush1.msra.mxu0 0.0
    %1774 = vmatprep.subr.mxu0 0.0
    %1775 = vmatpush1.msra.mxu0 0.0
    %1776 = vmatprep.subr.mxu0 0.0
    %1777 = vmatpush1.msra.mxu0 0.0
    %1778 = vmatprep.subr.mxu0 0.0
    %1779 = vmatpush1.msra.mxu0 0.0
    %1780 = vmatprep.subr.mxu0 0.0
    %1781 = vmatpush1.msra.mxu0 0.0
    %1782 = vmatprep.subr.mxu0 0.0
    %1783 = vmatpush1.msra.mxu0 0.0
    %1784 = vmatprep.subr.mxu0 0.0
    %1785 = vmatpush1.msra.mxu0 0.0
    %1786 = vmatprep.subr.mxu0 0.0
    %1787 = vmatpush1.msra.mxu0 0.0
    %1788 = vmatprep.subr.mxu0 0.0
    %1789 = vmatpush1.msra.mxu0 0.0
    %1790 = vmatprep.subr.mxu0 0.0
    %1791 = vmatpush1.msra.mxu0 0.0
    %1792 = vmatprep.subr.mxu0 0.0
    %1793 = vmatpush1.msra.mxu0 0.0
    %1794 = vmatprep.subr.mxu0 0.0
    %1795 = vmatpush1.msra.mxu0 0.0
    %1796 = vmatprep.subr.mxu0 0.0
    %1797 = vmatpush1.msra.mxu0 0.0
    %1798 = vmatprep.subr.mxu0 0.0
    %1799 = vmatpush1.msra.mxu0 0.0
    %1800 = vmatprep.subr.mxu0 0.0
    %1801 = vmatpush1.msra.mxu0 0.0
    %1802 = vmatprep.subr.mxu0 0.0
    %1803 = vmatpush1.msra.mxu0 0.0
    %1804 = vmatprep.subr.mxu0 0.0
    %1805 = vmatpush1.msra.mxu0 0.0
    %1806 = vmatprep.subr.mxu0 0.0
    %1807 = vmatpush1.msra.mxu0 0.0
    %1808 = vmatprep.subr.mxu0 0.0
    %1809 = vmatpush1.msra.mxu0 0.0
    %1810 = vmatprep.subr.mxu0 0.0
    %1811 = vmatpush1.msra.mxu0 0.0
    %1812 = vmatprep.subr.mxu0 0.0
    %1813 = vmatpush1.msra.mxu0 0.0
    %1814 = vmatprep.subr.mxu0 0.0
    %1815 = vmatpush1.msra.mxu0 0.0
    %1816 = vmatprep.subr.mxu0 0.0
    %1817 = vmatpush1.msra.mxu0 0.0
    %1818 = vmatprep.subr.mxu0 0.0
    %1819 = vmatpush1.msra.mxu0 0.0
    %1820 = vmatprep.mubr.f32.mxu0 0.0
    %1821 = vmatmul.mubr.f32.gmra.mrb[0].mxu0 %v1751
    %v1822 = vpop.f32.mrb[0].mxu0
    %v1823 = vadd.f32 %v1748, %v1822
    %v1824 = vpop.f32.mrb[0].mxu0
    %1825 = vmatprep.mubr.f32.mxu0 0.0
    %1826 = vmatmul.mubr.f32.gmra.mrb[0].mxu0 %v1754
    %v1827 = vpop.f32.mrb[0].mxu0
    %v1828 = vadd.f32 %v1748, %v1827
    %v1829 = vpop.f32.mrb[0].mxu0
    %1830 = vdwg.mxu0
    %v1831 = vmul.f32 %v1823, %v1823
    %v1832 = vmul.f32 %v1828, %v1828
    %v1833 = vmul.f32 %v1823, %v1831
    %v1834 = vmul.f32 %v1828, %v1832
    %v1835 = vmul.f32 %v1833, 0.044715
    %v1836 = vmul.f32 %v1834, 0.044715
    %v1837 = vadd.f32 %v1823, %v1835
    %v1838 = vadd.f32 %v1828, %v1836
    %v1839 = vmul.f32 %v1837, 0.7978846
    %v1840 = vmul.f32 %v1838, 0.7978846
    %v1841 = vtanh.pop %v1839
    %v1842 = vtanh.pop %v1840
    %v1843 = vadd.f32 %v1841, 1.0
    %v1844 = vadd.f32 %v1842, 1.0
    %v1845 = vmul.f32 %v1843, 0.5
    %v1846 = vmul.f32 %v1844, 0.5
    %v1847 = vmul.f32 %v1823, %v1845
    %v1848 = vmul.f32 %v1828, %v1846
    %v1849 = vlaneseq
    %v1850 = vshrl.u32 %v1849, 7
    %v1851 = vsub.s32 3, %v1850
    %v1852 = vrot.slane %v1040, %v1851
    %v1854 = vsel %vm889, %v1847, 0
    %v1857 = vsel %vm889, %v1848, 0
    %1859 = vmatprep.subr.mxu0 0.0
    %1860 = vmatpush1.msra.mxu0 %v1031
    %1861 = vmatprep.subr.mxu0 0.0
    %1862 = vmatpush1.msra.mxu0 %v1032
    %1863 = vmatprep.subr.mxu0 0.0
    %1864 = vmatpush1.msra.mxu0 %v1033
    %1865 = vmatprep.subr.mxu0 0.0
    %1866 = vmatpush1.msra.mxu0 %v1034
    %1867 = vmatprep.subr.mxu0 0.0
    %1868 = vmatpush1.msra.mxu0 %v1035
    %1869 = vmatprep.subr.mxu0 0.0
    %1870 = vmatpush1.msra.mxu0 %v1036
    %1871 = vmatprep.subr.mxu0 0.0
    %1872 = vmatpush1.msra.mxu0 %v1037
    %1873 = vmatprep.subr.mxu0 0.0
    %1874 = vmatpush1.msra.mxu0 %v1038
    %1875 = vmatprep.subr.mxu0 0.0
    %1876 = vmatpush1.msra.mxu0 0.0
    %1877 = vmatprep.subr.mxu0 0.0
    %1878 = vmatpush1.msra.mxu0 0.0
    %1879 = vmatprep.subr.mxu0 0.0
    %1880 = vmatpush1.msra.mxu0 0.0
    %1881 = vmatprep.subr.mxu0 0.0
    %1882 = vmatpush1.msra.mxu0 0.0
    %1883 = vmatprep.subr.mxu0 0.0
    %1884 = vmatpush1.msra.mxu0 0.0
    %1885 = vmatprep.subr.mxu0 0.0
    %1886 = vmatpush1.msra.mxu0 0.0
    %1887 = vmatprep.subr.mxu0 0.0
    %1888 = vmatpush1.msra.mxu0 0.0
    %1889 = vmatprep.subr.mxu0 0.0
    %1890 = vmatpush1.msra.mxu0 0.0
    %1891 = vmatprep.subr.mxu0 0.0
    %1892 = vmatpush1.msra.mxu0 0.0
    %1893 = vmatprep.subr.mxu0 0.0
    %1894 = vmatpush1.msra.mxu0 0.0
    %1895 = vmatprep.subr.mxu0 0.0
    %1896 = vmatpush1.msra.mxu0 0.0
    %1897 = vmatprep.subr.mxu0 0.0
    %1898 = vmatpush1.msra.mxu0 0.0
    %1899 = vmatprep.subr.mxu0 0.0
    %1900 = vmatpush1.msra.mxu0 0.0
    %1901 = vmatprep.subr.mxu0 0.0
    %1902 = vmatpush1.msra.mxu0 0.0
    %1903 = vmatprep.subr.mxu0 0.0
    %1904 = vmatpush1.msra.mxu0 0.0
    %1905 = vmatprep.subr.mxu0 0.0
    %1906 = vmatpush1.msra.mxu0 0.0
    %1907 = vmatprep.subr.mxu0 0.0
    %1908 = vmatpush1.msra.mxu0 0.0
    %1909 = vmatprep.subr.mxu0 0.0
    %1910 = vmatpush1.msra.mxu0 0.0
    %1911 = vmatprep.subr.mxu0 0.0
    %1912 = vmatpush1.msra.mxu0 0.0
    %1913 = vmatprep.subr.mxu0 0.0
    %1914 = vmatpush1.msra.mxu0 0.0
    %1915 = vmatprep.subr.mxu0 0.0
    %1916 = vmatpush1.msra.mxu0 0.0
    %1917 = vmatprep.subr.mxu0 0.0
    %1918 = vmatpush1.msra.mxu0 0.0
    %1919 = vmatprep.subr.mxu0 0.0
    %1920 = vmatpush1.msra.mxu0 0.0
    %1921 = vmatprep.subr.mxu0 0.0
    %1922 = vmatpush1.msra.mxu0 0.0
    %1923 = vmatprep.mubr.f32.mxu0 0.0
    %1924 = vmatmul.mubr.f32.gmra.mrb[0].mxu0 %v1854
    %v1925 = vpop.f32.mrb[0].mxu0
    %v1926 = vadd.f32 %v1852, %v1925
    %v1927 = vpop.f32.mrb[0].mxu0
    %1928 = vmatprep.mubr.f32.mxu0 0.0
    %1929 = vmatmul.mubr.f32.gmra.mrb[0].mxu0 %v1857
    %v1930 = vpop.f32.mrb[0].mxu0
    %v1931 = vadd.f32 %v1852, %v1930
    %v1932 = vpop.f32.mrb[0].mxu0
    %1933 = vdwg.mxu0
    %v1934 = vadd.f32 %v1742, %v1926
    %v1935 = vadd.f32 %v1743, %v1931
    %v1936 = vsel %vm80, %v1934, 0.0
    %1937 = vadd.xlane.f32.xlu0 %v1936
    %v1938 = vpop.xlane.xlu0 %1937
    %v1939 = vsel %vm80, %v1935, 0.0
    %1940 = vadd.xlane.f32.xlu0 %v1939
    %v1941 = vpop.xlane.xlu0 %1940
    %v1942 = vmul.f32 %v1938, %v747
    %v1943 = vmul.f32 %v1941, %v747
    %v1944 = vsub.f32 %v1934, %v1942
    %v1945 = vsub.f32 %v1935, %v1943
    %v1946 = vmul.f32 %v1944, %v1944
    %v1947 = vmul.f32 %v1945, %v1945
    %v1948 = vsel %vm80, %v1946, 0.0
    %1949 = vadd.xlane.f32.xlu0 %v1948
    %v1950 = vpop.xlane.xlu0 %1949
    %v1951 = vsel %vm80, %v1947, 0.0
    %1952 = vadd.xlane.f32.xlu0 %v1951
    %v1953 = vpop.xlane.xlu0 %1952
    %v1954 = vmul.f32 %v1950, %v747
    %v1955 = vmul.f32 %v1953, %v747
    %v1956 = vadd.f32 %v1954, 1e-12
    %v1957 = vadd.f32 %v1955, 1e-12
    %v1958 = vrsqrt.pop %v1956
    %v1959 = vrsqrt.pop %v1957
    %v1960 = vmul.f32 %v1944, %v1958
    %v1961 = vmul.f32 %v1945, %v1959
    %v1962 = vlaneseq
    %v1963 = vshrl.u32 %v1962, 7
    %v1964 = vsub.s32 4, %v1963
    %v1965 = vrot.slane %v1040, %v1964
    %v1966 = vmul.f32 %v1960, %v1965
    %v1967 = vmul.f32 %v1961, %v1965
    %v1968 = vlaneseq
    %v1969 = vshrl.u32 %v1968, 7
    %v1970 = vsub.s32 5, %v1969
    %v1971 = vrot.slane %v1040, %v1970
    %v1972 = vadd.f32 %v1966, %v1971
    %v1973 = vadd.f32 %v1967, %v1971
    %1974 = vst.msk [vmem:[#allocation5] sm:$0xff] %vm80, %v1972
    %1975 = vst.msk [vmem:[#allocation5 + $0x8] sm:$0xff] %vm80, %v1973
    // Predicated region
    $region42: #{tpu_custom_call.1} parent=1 // pred_check
      _
    $region43: #{tpu_custom_call.1} parent=1 // pred_check_branch
      %1977 = sbr.rel (0) target = $region45
    $region44: #{tpu_custom_call.1} parent=1 // pred_region
      %s1979 = ssub.s32 256, 256
      %1980 = vsyncadd [#allocation4], %s1979
      %s1981 = sshll.u32 [#allocation5], 4
      %s1982 = int_to_ptr.vmem [resolvable:$true] %s1981
      %1987 = dma.vmem_to_hbm [thread:$0]  %s1982, 256, %s9, [#allocation4], 128, 128, 8
    $region45: #{tpu_custom_call.1} parent=1 // pred_fallthru
      _
    // Predicated region
    $region46: #{tpu_custom_call.1} parent=1 // pred_check
      _
    $region47: #{tpu_custom_call.1} parent=1 // pred_check_branch
      %1989 = sbr.rel (0) target = $region49
    $region48: #{tpu_custom_call.1} parent=1 // pred_region
      %1990 = dma.done [#allocation4], 256
    $region49: #{tpu_custom_call.1} parent=1 // pred_fallthru
      _
    %1991 = vsyncpa [#allocation3], 1
    %1992 = vsyncpa [#allocation4], 1

</llo_original>
